<compile_context>
chip_gen: v7x
topology: tpu7x:2x2x1
jax: 0.10.0
libtpu: 0.0.40
codegen_flags: <defaults>
</compile_context>

<pallas_src>
import jax
import jax.numpy as jnp
from jax.experimental import pallas as pl
from jax.experimental.pallas import tpu as pltpu


def _collision_mlp_kernel(x_ref,
                          w1_ref, b1_ref,
                          w2_ref, b2_ref,
                          w3_ref, b3_ref,
                          w4_ref, b4_ref,
                          o_ref):
    """One batch tile.  Transposed layout: batch on lanes, features on sublanes."""
    prec = jax.lax.Precision.HIGHEST   # exact f32 matmuls; MXU is idle anyway

    # fc1 + ReLU: (32, in) x (bt, in), contracting the feature axis of both
    # operands -> (32, bt).  No materialized transpose of x.
    h = jax.lax.dot_general(
        w1_ref[...], x_ref[...], (((1,), (1,)), ((), ())),
        precision=prec, preferred_element_type=jnp.float32) + b1_ref[...]
    h = jnp.maximum(h, 0.0)                                   # (32, bt) f32

    # dropout(p=0.3): identity in eval/inference mode.
    # TODO(synk): training-mode dropout (PRNG mask + 1/(1-p) scaling) not implemented.

    # fc2 + ReLU
    h = jnp.dot(w2_ref[...], h, precision=prec,
                preferred_element_type=jnp.float32) + b2_ref[...]
    h = jnp.maximum(h, 0.0)                                   # (16, bt) f32

    # fc3 + ReLU
    h = jnp.dot(w3_ref[...], h, precision=prec,
                preferred_element_type=jnp.float32) + b3_ref[...]
    h = jnp.maximum(h, 0.0)                                   # (8, bt) f32

    # fc4 + Sigmoid -> (1, bt): lane-dense output row
    z = jnp.dot(w4_ref[...], h, precision=prec,
                preferred_element_type=jnp.float32) + b4_ref[...]
    o_ref[...] = jax.nn.sigmoid(z).reshape(o_ref.shape)


def _pick_batch_tile(B, max_tile):
    """Tile policy: exact single full block for tiny batches; otherwise a
    multiple of 128 capped at max_tile, preferring >= 2 grid steps so the
    "parallel" axis shards across both TensorCores on v7x and the x DMA is
    double-buffered against compute."""
    if B < 256:
        return B                                  # full-array block: always legal
    tile = min(max_tile, pl.cdiv(B, 128) * 128)
    if pl.cdiv(B, tile) < 2:
        tile = max(128, pl.cdiv(pl.cdiv(B, 2), 128) * 128)
    return tile


def collision_predict_forward(x, params, *, max_batch_tile=1024):
    """x: (B, input_size) float32.  params: PyTorch-layout weights/biases."""
    assert x.ndim == 2
    B, input_size = x.shape
    assert max_batch_tile % 128 == 0, "max_batch_tile must be a multiple of 128"

    tile = _pick_batch_tile(B, max_batch_tile)
    num_tiles = pl.cdiv(B, tile)

    w1, b1 = params["w1"], params["b1"]
    w2, b2 = params["w2"], params["b2"]
    w3, b3 = params["w3"], params["b3"]
    w4, b4 = params["w4"], params["b4"]

    def wspec(shape):
        # whole-array block, same block for every grid step (Pallas skips
        # re-fetching blocks whose index does not change between steps).
        return pl.BlockSpec(shape, lambda i: (0, 0))

    n_params = sum(int(params[k].size) for k in params)
    cost = pl.CostEstimate(
        flops=2 * B * (input_size * 32 + 32 * 16 + 16 * 8 + 8 * 1),
        transcendentals=B,                                    # sigmoid exp
        bytes_accessed=4 * (B * input_size + n_params + B))

    out = pl.pallas_call(
        _collision_mlp_kernel,
        out_shape=jax.ShapeDtypeStruct((num_tiles, 1, tile), jnp.float32),
        grid_spec=pltpu.PrefetchScalarGridSpec(
            num_scalar_prefetch=0,
            grid=(num_tiles,),
            in_specs=[
                pl.BlockSpec((tile, input_size), lambda i: (i, 0)),
                wspec(w1.shape), wspec(b1.shape),
                wspec(w2.shape), wspec(b2.shape),
                wspec(w3.shape), wspec(b3.shape),
                wspec(w4.shape), wspec(b4.shape),
            ],
            out_specs=pl.BlockSpec((1, 1, tile), lambda i: (i, 0, 0)),
        ),
        compiler_params=pltpu.CompilerParams(
            dimension_semantics=("parallel",)),
        cost_estimate=cost,
    )(x, w1, b1, w2, b2, w3, b3, w4, b4)

    # (num_tiles, 1, tile) lane-dense slab -> (B, 1), dropping clipped edge lanes.
    return out.reshape(-1)[:B].reshape(B, 1)


def init_params(key, input_size):
    """nn.Linear-style init, PyTorch layout: w=(out,in), b=(out,1)."""
    sizes = [(input_size, 32), (32, 16), (16, 8), (8, 1)]
    params = {}
    for idx, (fan_in, fan_out) in enumerate(sizes, start=1):
        key, kw, kb = jax.random.split(key, 3)
        bound = float(fan_in) ** -0.5
        params[f"w{idx}"] = jax.random.uniform(
            kw, (fan_out, fan_in), jnp.float32, -bound, bound)
        params[f"b{idx}"] = jax.random.uniform(
            kb, (fan_out, 1), jnp.float32, -bound, bound)
    return params


def reference_forward(x, params):
    """Plain-JAX f32 reference (matches the PyTorch f32 CollisionPredict)."""
    prec = jax.lax.Precision.HIGHEST

    def layer(h, w, b):
        return jnp.dot(h, w.T, precision=prec,
                       preferred_element_type=jnp.float32) + b.T

    h = jnp.maximum(layer(x, params["w1"], params["b1"]), 0.0)
    # dropout: identity (eval mode)
    h = jnp.maximum(layer(h, params["w2"], params["b2"]), 0.0)
    h = jnp.maximum(layer(h, params["w3"], params["b3"]), 0.0)
    return jax.nn.sigmoid(layer(h, params["w4"], params["b4"]))


if __name__ == "__main__":
    key = jax.random.PRNGKey(0)
    input_size = 16
    kx1, kx2, kx3, kp = jax.random.split(key, 4)
    params = init_params(kp, input_size)

    # Case 1: tiny batch -> single exact full-array block (no padding, no clipping).
    x_small = jax.random.normal(kx1, (8, input_size), jnp.float32)
    y_small = jax.block_until_ready(collision_predict_forward(x_small, params))
    assert y_small.shape == (8, 1)
    assert jnp.allclose(y_small, reference_forward(x_small, params),
                        atol=1e-4, rtol=1e-4)

    # Case 2: ragged batch -> clipped edge block; garbage lanes dropped by [:B].
    x_rag = jax.random.normal(kx2, (300, input_size), jnp.float32)
    y_rag = jax.block_until_ready(collision_predict_forward(x_rag, params))
    assert y_rag.shape == (300, 1)
    assert jnp.allclose(y_rag, reference_forward(x_rag, params),
                        atol=1e-4, rtol=1e-4)

    # Case 3: two even tiles -> pipelined x DMA; dual-TensorCore sharding on v7x.
    x_big = jax.random.normal(kx3, (512, input_size), jnp.float32)
    y_big = jax.block_until_ready(collision_predict_forward(x_big, params))
    assert y_big.shape == (512, 1)
    assert jnp.allclose(y_big, reference_forward(x_big, params),
                        atol=1e-4, rtol=1e-4)

    print("KERNEL_OK")
</pallas_src>

<mosaic_0001>
module attributes {stable_mosaic.version = 11 : i64} {
  func.func @_collision_mlp_kernel(%arg0: i32, %arg1: memref<8x16xf32, #tpu.memory_space<vmem>>, %arg2: memref<32x16xf32, #tpu.memory_space<vmem>>, %arg3: memref<32x1xf32, #tpu.memory_space<vmem>>, %arg4: memref<16x32xf32, #tpu.memory_space<vmem>>, %arg5: memref<16x1xf32, #tpu.memory_space<vmem>>, %arg6: memref<8x16xf32, #tpu.memory_space<vmem>>, %arg7: memref<8x1xf32, #tpu.memory_space<vmem>>, %arg8: memref<1x8xf32, #tpu.memory_space<vmem>>, %arg9: memref<1x1xf32, #tpu.memory_space<vmem>>, %arg10: memref<1x1x8xf32, #tpu.memory_space<vmem>>) attributes {dimension_semantics = [#tpu.dimension_semantics<parallel>], iteration_bounds = array<i64: 1>, scalar_prefetch = 0 : i64, scratch_operands = 0 : i64, tpu.core_type = #tpu.core_type<tc>, window_params = [{transform_indices = @transform_0, window_bounds = array<i64: 8, 16>}, {pipeline_mode = #tpu.pipeline_mode<synchronous>, transform_indices = @transform_1, window_bounds = array<i64: 32, 16>}, {pipeline_mode = #tpu.pipeline_mode<synchronous>, transform_indices = @transform_2, window_bounds = array<i64: 32, 1>}, {pipeline_mode = #tpu.pipeline_mode<synchronous>, transform_indices = @transform_3, window_bounds = array<i64: 16, 32>}, {pipeline_mode = #tpu.pipeline_mode<synchronous>, transform_indices = @transform_4, window_bounds = array<i64: 16, 1>}, {pipeline_mode = #tpu.pipeline_mode<synchronous>, transform_indices = @transform_5, window_bounds = array<i64: 8, 16>}, {pipeline_mode = #tpu.pipeline_mode<synchronous>, transform_indices = @transform_6, window_bounds = array<i64: 8, 1>}, {pipeline_mode = #tpu.pipeline_mode<synchronous>, transform_indices = @transform_7, window_bounds = array<i64: 1, 8>}, {pipeline_mode = #tpu.pipeline_mode<synchronous>, transform_indices = @transform_8, window_bounds = array<i64: 1, 1>}, {transform_indices = @transform_9, window_bounds = array<i64: 1, 1, 8>}]} {
    %c0 = arith.constant 0 : index
    %c0_0 = arith.constant 0 : index
    %0 = vector.load %arg2[%c0, %c0_0] : memref<32x16xf32, #tpu.memory_space<vmem>>, vector<32x16xf32>
    %c0_1 = arith.constant 0 : index
    %c0_2 = arith.constant 0 : index
    %1 = vector.load %arg1[%c0_1, %c0_2] : memref<8x16xf32, #tpu.memory_space<vmem>>, vector<8x16xf32>
    %cst = arith.constant dense<0.000000e+00> : vector<32x8xf32>
    %2 = tpu.matmul %0, %1, %cst {dimension_numbers = #tpu.dot_dimension_numbers<[1], [1], [0], [0], [0, 0, 1, 0], [], []>, precision = #tpu.contract_precision<fp32>} : vector<32x16xf32>, vector<8x16xf32>, vector<32x8xf32> -> vector<32x8xf32>
    %c0_3 = arith.constant 0 : index
    %c0_4 = arith.constant 0 : index
    %3 = vector.load %arg3[%c0_3, %c0_4] : memref<32x1xf32, #tpu.memory_space<vmem>>, vector<32x1xf32>
    %4 = vector.broadcast %3 : vector<32x1xf32> to vector<32x8xf32>
    %5 = arith.addf %2, %4 : vector<32x8xf32>
    %cst_5 = arith.constant 0.000000e+00 : f32
    %6 = vector.broadcast %cst_5 : f32 to vector<32x8xf32>
    %7 = arith.maximumf %5, %6 : vector<32x8xf32>
    %c0_6 = arith.constant 0 : index
    %c0_7 = arith.constant 0 : index
    %8 = vector.load %arg4[%c0_6, %c0_7] : memref<16x32xf32, #tpu.memory_space<vmem>>, vector<16x32xf32>
    %cst_8 = arith.constant dense<0.000000e+00> : vector<16x8xf32>
    %9 = tpu.matmul %8, %7, %cst_8 {dimension_numbers = #tpu.dot_dimension_numbers<[1], [0], [0], [1], [0, 0, 1, 1], [], []>, precision = #tpu.contract_precision<fp32>} : vector<16x32xf32>, vector<32x8xf32>, vector<16x8xf32> -> vector<16x8xf32>
    %c0_9 = arith.constant 0 : index
    %c0_10 = arith.constant 0 : index
    %10 = vector.load %arg5[%c0_9, %c0_10] : memref<16x1xf32, #tpu.memory_space<vmem>>, vector<16x1xf32>
    %11 = vector.broadcast %10 : vector<16x1xf32> to vector<16x8xf32>
    %12 = arith.addf %9, %11 : vector<16x8xf32>
    %cst_11 = arith.constant 0.000000e+00 : f32
    %13 = vector.broadcast %cst_11 : f32 to vector<16x8xf32>
    %14 = arith.maximumf %12, %13 : vector<16x8xf32>
    %c0_12 = arith.constant 0 : index
    %c0_13 = arith.constant 0 : index
    %15 = vector.load %arg6[%c0_12, %c0_13] : memref<8x16xf32, #tpu.memory_space<vmem>>, vector<8x16xf32>
    %cst_14 = arith.constant dense<0.000000e+00> : vector<8x8xf32>
    %16 = tpu.matmul %15, %14, %cst_14 {dimension_numbers = #tpu.dot_dimension_numbers<[1], [0], [0], [1], [0, 0, 1, 1], [], []>, precision = #tpu.contract_precision<fp32>} : vector<8x16xf32>, vector<16x8xf32>, vector<8x8xf32> -> vector<8x8xf32>
    %c0_15 = arith.constant 0 : index
    %c0_16 = arith.constant 0 : index
    %17 = vector.load %arg7[%c0_15, %c0_16] : memref<8x1xf32, #tpu.memory_space<vmem>>, vector<8x1xf32>
    %18 = vector.broadcast %17 : vector<8x1xf32> to vector<8x8xf32>
    %19 = arith.addf %16, %18 : vector<8x8xf32>
    %cst_17 = arith.constant 0.000000e+00 : f32
    %20 = vector.broadcast %cst_17 : f32 to vector<8x8xf32>
    %21 = arith.maximumf %19, %20 : vector<8x8xf32>
    %c0_18 = arith.constant 0 : index
    %c0_19 = arith.constant 0 : index
    %22 = vector.load %arg8[%c0_18, %c0_19] : memref<1x8xf32, #tpu.memory_space<vmem>>, vector<1x8xf32>
    %cst_20 = arith.constant dense<0.000000e+00> : vector<1x8xf32>
    %23 = tpu.matmul %22, %21, %cst_20 {dimension_numbers = #tpu.dot_dimension_numbers<[1], [0], [0], [1], [0, 0, 1, 1], [], []>, precision = #tpu.contract_precision<fp32>} : vector<1x8xf32>, vector<8x8xf32>, vector<1x8xf32> -> vector<1x8xf32>
    %c0_21 = arith.constant 0 : index
    %c0_22 = arith.constant 0 : index
    %24 = vector.load %arg9[%c0_21, %c0_22] : memref<1x1xf32, #tpu.memory_space<vmem>>, vector<1x1xf32>
    %25 = vector.broadcast %24 : vector<1x1xf32> to vector<1x8xf32>
    %26 = arith.addf %23, %25 : vector<1x8xf32>
    %27 = arith.negf %26 : vector<1x8xf32>
    %28 = math.exp %27 : vector<1x8xf32>
    %cst_23 = arith.constant 1.000000e+00 : f32
    %29 = vector.broadcast %cst_23 : f32 to vector<1x8xf32>
    %30 = arith.addf %29, %28 : vector<1x8xf32>
    %31 = arith.divf %29, %30 : vector<1x8xf32>
    %32 = vector.shape_cast %31 : vector<1x8xf32> to vector<1x1x8xf32>
    %c0_24 = arith.constant 0 : index
    %c0_25 = arith.constant 0 : index
    %c0_26 = arith.constant 0 : index
    %33 = vector.load %arg10[%c0_24, %c0_25, %c0_26] : memref<1x1x8xf32, #tpu.memory_space<vmem>>, vector<1x1x8xf32>
    tpu.vector_store %arg10[%c0_24, %c0_25, %c0_26], %32 {strides = array<i32>} : memref<1x1x8xf32, #tpu.memory_space<vmem>>, vector<1x1x8xf32>,
    return
  }
  func.func @transform_0(%arg0: i32) -> (i32, i32) {
    %c0_i32 = arith.constant 0 : i32
    %c0_i32_0 = arith.constant 0 : i32
    return %arg0, %c0_i32 : i32, i32
  }
  func.func @transform_1(%arg0: i32) -> (i32, i32) {
    %c0_i32 = arith.constant 0 : i32
    %c0_i32_0 = arith.constant 0 : i32
    %c0_i32_1 = arith.constant 0 : i32
    return %c0_i32, %c0_i32_0 : i32, i32
  }
  func.func @transform_2(%arg0: i32) -> (i32, i32) {
    %c0_i32 = arith.constant 0 : i32
    %c0_i32_0 = arith.constant 0 : i32
    %c0_i32_1 = arith.constant 0 : i32
    return %c0_i32, %c0_i32_0 : i32, i32
  }
  func.func @transform_3(%arg0: i32) -> (i32, i32) {
    %c0_i32 = arith.constant 0 : i32
    %c0_i32_0 = arith.constant 0 : i32
    %c0_i32_1 = arith.constant 0 : i32
    return %c0_i32, %c0_i32_0 : i32, i32
  }
  func.func @transform_4(%arg0: i32) -> (i32, i32) {
    %c0_i32 = arith.constant 0 : i32
    %c0_i32_0 = arith.constant 0 : i32
    %c0_i32_1 = arith.constant 0 : i32
    return %c0_i32, %c0_i32_0 : i32, i32
  }
  func.func @transform_5(%arg0: i32) -> (i32, i32) {
    %c0_i32 = arith.constant 0 : i32
    %c0_i32_0 = arith.constant 0 : i32
    %c0_i32_1 = arith.constant 0 : i32
    return %c0_i32, %c0_i32_0 : i32, i32
  }
  func.func @transform_6(%arg0: i32) -> (i32, i32) {
    %c0_i32 = arith.constant 0 : i32
    %c0_i32_0 = arith.constant 0 : i32
    %c0_i32_1 = arith.constant 0 : i32
    return %c0_i32, %c0_i32_0 : i32, i32
  }
  func.func @transform_7(%arg0: i32) -> (i32, i32) {
    %c0_i32 = arith.constant 0 : i32
    %c0_i32_0 = arith.constant 0 : i32
    %c0_i32_1 = arith.constant 0 : i32
    return %c0_i32, %c0_i32_0 : i32, i32
  }
  func.func @transform_8(%arg0: i32) -> (i32, i32) {
    %c0_i32 = arith.constant 0 : i32
    %c0_i32_0 = arith.constant 0 : i32
    %c0_i32_1 = arith.constant 0 : i32
    return %c0_i32, %c0_i32_0 : i32, i32
  }
  func.func @transform_9(%arg0: i32) -> (i32, i32, i32) {
    %c0_i32 = arith.constant 0 : i32
    %c0_i32_0 = arith.constant 0 : i32
    %c0_i32_1 = arith.constant 0 : i32
    return %arg0, %c0_i32, %c0_i32_0 : i32, i32, i32
  }
}

</mosaic_0001>

<llo_original>
// kernel: tpu_custom_call.1
$region0: #{tpu_custom_call.1}
  #allocation0 [shape = 'u32[]', space=smem, size = 0x4, offset = 0x4, fixed_abs, tag = 'smem constant byte address 0x4 - core index']
  #allocation1 [shape = 'u32[144,128]{1,0:T(1,128)}', space=vmem, size = 0x12000, scoped, tag = 'internal scratch']
  #allocation2 [shape = 'f32[1,1]{1,0:T(1,128)S(1)}', space=vmem, size = 0x200, scoped, tag = 'scoped memory for tpu_custom_call.1']
  %s0 = inlined_call_operand.vmem [shape: f32[8,16], index: 0, kind: input, shape index: {}]
  %s1 = inlined_call_operand.vmem [shape: f32[32,16], index: 1, kind: input, shape index: {}]
  %s2 = inlined_call_operand.vmem [shape: f32[32,1], index: 2, kind: input, shape index: {}]
  %s3 = inlined_call_operand.vmem [shape: f32[16,32], index: 3, kind: input, shape index: {}]
  %s4 = inlined_call_operand.vmem [shape: f32[16,1], index: 4, kind: input, shape index: {}]
  %s5 = inlined_call_operand.vmem [shape: f32[8,16], index: 5, kind: input, shape index: {}]
  %s6 = inlined_call_operand.vmem [shape: f32[8,1], index: 6, kind: input, shape index: {}]
  %s7 = inlined_call_operand.vmem [shape: f32[1,8], index: 7, kind: input, shape index: {}]
  %s8 = inlined_call_operand.<no memory space> [shape: f32[1,1], index: 8, kind: input, shape index: {}]
  %s9 = inlined_call_operand.hbm [shape: f32[1,1,8], index: 9, kind: output, shape index: {}]
  %s10 = sld [smem:[#allocation0]]
  $region46: #{tpu_custom_call.1} parent=0
    _
  %s12 = ssub.s32 1, %s10
  %s13 = scalar_select 0, %s12, %s10
  %v14 = vstv %s8
  %15 = vst [vmem:[#allocation2] sm:$0x1] %v14
  $region1: #{tpu_custom_call.1} parent=0
    #allocation3 [shape = 'u8[512]{0}', space=vmem, size = 0x400, scoped, tag = 'output window, operand 0, single buffered']
    #allocation4 [shape = 's32[1]{0}', space=sflag, size = 0x4, scoped, tag = 'scoped memory for tpu_custom_call.1']
    %16 = vsyncpa [#allocation4], 0
    // Predicated region
    $region2: #{tpu_custom_call.1} parent=1 // pred_check
      _
    $region3: #{tpu_custom_call.1} parent=1 // pred_check_branch
      %18 = sbr.rel (0) target = $region5
    $region4: #{tpu_custom_call.1} parent=1 // pred_region
      _
    $region5: #{tpu_custom_call.1} parent=1 // pred_fallthru
      _
    // Predicated region
    $region6: #{tpu_custom_call.1} parent=1 // pred_check
      _
    $region7: #{tpu_custom_call.1} parent=1 // pred_check_branch
      %20 = sbr.rel (0) target = $region9
    $region8: #{tpu_custom_call.1} parent=1 // pred_region
      _
    $region9: #{tpu_custom_call.1} parent=1 // pred_fallthru
      _
    // Predicated region
    $region10: #{tpu_custom_call.1} parent=1 // pred_check
      _
    $region11: #{tpu_custom_call.1} parent=1 // pred_check_branch
      %22 = sbr.rel (0) target = $region13
    $region12: #{tpu_custom_call.1} parent=1 // pred_region
      _
    $region13: #{tpu_custom_call.1} parent=1 // pred_fallthru
      _
    // Predicated region
    $region14: #{tpu_custom_call.1} parent=1 // pred_check
      _
    $region15: #{tpu_custom_call.1} parent=1 // pred_check_branch
      %24 = sbr.rel (0) target = $region17
    $region16: #{tpu_custom_call.1} parent=1 // pred_region
      _
    $region17: #{tpu_custom_call.1} parent=1 // pred_fallthru
      _
    // Predicated region
    $region18: #{tpu_custom_call.1} parent=1 // pred_check
      _
    $region19: #{tpu_custom_call.1} parent=1 // pred_check_branch
      %26 = sbr.rel (0) target = $region21
    $region20: #{tpu_custom_call.1} parent=1 // pred_region
      _
    $region21: #{tpu_custom_call.1} parent=1 // pred_fallthru
      _
    // Predicated region
    $region22: #{tpu_custom_call.1} parent=1 // pred_check
      _
    $region23: #{tpu_custom_call.1} parent=1 // pred_check_branch
      %28 = sbr.rel (0) target = $region25
    $region24: #{tpu_custom_call.1} parent=1 // pred_region
      _
    $region25: #{tpu_custom_call.1} parent=1 // pred_fallthru
      _
    // Predicated region
    $region26: #{tpu_custom_call.1} parent=1 // pred_check
      _
    $region27: #{tpu_custom_call.1} parent=1 // pred_check_branch
      %30 = sbr.rel (0) target = $region29
    $region28: #{tpu_custom_call.1} parent=1 // pred_region
      _
    $region29: #{tpu_custom_call.1} parent=1 // pred_fallthru
      _
    // Predicated region
    $region30: #{tpu_custom_call.1} parent=1 // pred_check
      _
    $region31: #{tpu_custom_call.1} parent=1 // pred_check_branch
      %32 = sbr.rel (0) target = $region33
    $region32: #{tpu_custom_call.1} parent=1 // pred_region
      _
    $region33: #{tpu_custom_call.1} parent=1 // pred_fallthru
      _
    // Predicated region
    $region34: #{tpu_custom_call.1} parent=1 // pred_check
      _
    $region35: #{tpu_custom_call.1} parent=1 // pred_check_branch
      %34 = sbr.rel (0) target = $region37
    $region36: #{tpu_custom_call.1} parent=1 // pred_region
      _
    $region37: #{tpu_custom_call.1} parent=1 // pred_fallthru
      _
    %v35 = vld [vmem:[%s1] sm:$0xff]
    %v36 = vld [vmem:[%s1 + $0x8] sm:$0xff]
    %v37 = vld [vmem:[%s1 + $0x10] sm:$0xff]
    %v38 = vld [vmem:[%s1 + $0x18] sm:$0xff]
    %v39 = vld [vmem:[%s0] sm:$0xff]
    %v40 = vld [vmem:[%s2] sm:$0xff]
    %v41 = vld [vmem:[%s2 + $0x8] sm:$0xff]
    %v42 = vld [vmem:[%s2 + $0x10] sm:$0xff]
    %v43 = vld [vmem:[%s2 + $0x18] sm:$0xff]
    %45 = vset.pattern.permute.xlu0 0
    %46 = vperm.xlu0 %45, %v40
    %v47 = vpop.permute.xlu0 %46
    %50 = vset.pattern.permute.xlu0 0
    %51 = vperm.xlu0 %50, %v41
    %v52 = vpop.permute.xlu0 %51
    %55 = vset.pattern.permute.xlu0 0
    %56 = vperm.xlu0 %55, %v42
    %v57 = vpop.permute.xlu0 %56
    %60 = vset.pattern.permute.xlu0 0
    %61 = vperm.xlu0 %60, %v43
    %v62 = vpop.permute.xlu0 %61
    %vm64 = vcmask 130048
    %v66 = vsel %vm64, %v35, 0
    %v69 = vsel %vm64, %v36, 0
    %v72 = vsel %vm64, %v37, 0
    %v75 = vsel %vm64, %v38, 0
    %v78 = vsel %vm64, %v39, 0
    %80 = vmatprep.subr.mxu0 0.0
    %v81 = vand.u32 %v78, 4294901760
    %82 = vmatpush1.xpose.msra.mxu0 %v81
    %83 = vmatprep.subr.mxu0 0.0
    %84 = vmatpush1.xpose.msra.mxu0 0.0
    %85 = vmatprep.subr.mxu0 0.0
    %86 = vmatpush1.xpose.msra.mxu0 0.0
    %87 = vmatprep.subr.mxu0 0.0
    %88 = vmatpush1.xpose.msra.mxu0 0.0
    %89 = vmatprep.subr.mxu0 0.0
    %90 = vmatpush1.xpose.msra.mxu0 0.0
    %91 = vmatprep.subr.mxu0 0.0
    %92 = vmatpush1.xpose.msra.mxu0 0.0
    %93 = vmatprep.subr.mxu0 0.0
    %94 = vmatpush1.xpose.msra.mxu0 0.0
    %95 = vmatprep.subr.mxu0 0.0
    %96 = vmatpush1.xpose.msra.mxu0 0.0
    %97 = vmatprep.subr.mxu0 0.0
    %98 = vmatpush1.xpose.msra.mxu0 0.0
    %99 = vmatprep.subr.mxu0 0.0
    %100 = vmatpush1.xpose.msra.mxu0 0.0
    %101 = vmatprep.subr.mxu0 0.0
    %102 = vmatpush1.xpose.msra.mxu0 0.0
    %103 = vmatprep.subr.mxu0 0.0
    %104 = vmatpush1.xpose.msra.mxu0 0.0
    %105 = vmatprep.subr.mxu0 0.0
    %106 = vmatpush1.xpose.msra.mxu0 0.0
    %107 = vmatprep.subr.mxu0 0.0
    %108 = vmatpush1.xpose.msra.mxu0 0.0
    %109 = vmatprep.subr.mxu0 0.0
    %110 = vmatpush1.xpose.msra.mxu0 0.0
    %111 = vmatprep.subr.mxu0 0.0
    %112 = vmatpush1.xpose.msra.mxu0 0.0
    %113 = vmatprep.subr.mxu0 0.0
    %114 = vmatpush1.xpose.msra.mxu0 0.0
    %115 = vmatprep.subr.mxu0 0.0
    %116 = vmatpush1.xpose.msra.mxu0 0.0
    %117 = vmatprep.subr.mxu0 0.0
    %118 = vmatpush1.xpose.msra.mxu0 0.0
    %119 = vmatprep.subr.mxu0 0.0
    %120 = vmatpush1.xpose.msra.mxu0 0.0
    %121 = vmatprep.subr.mxu0 0.0
    %122 = vmatpush1.xpose.msra.mxu0 0.0
    %123 = vmatprep.subr.mxu0 0.0
    %124 = vmatpush1.xpose.msra.mxu0 0.0
    %125 = vmatprep.subr.mxu0 0.0
    %126 = vmatpush1.xpose.msra.mxu0 0.0
    %127 = vmatprep.subr.mxu0 0.0
    %128 = vmatpush1.xpose.msra.mxu0 0.0
    %129 = vmatprep.subr.mxu0 0.0
    %130 = vmatpush1.xpose.msra.mxu0 0.0
    %131 = vmatprep.subr.mxu0 0.0
    %132 = vmatpush1.xpose.msra.mxu0 0.0
    %133 = vmatprep.subr.mxu0 0.0
    %134 = vmatpush1.xpose.msra.mxu0 0.0
    %135 = vmatprep.subr.mxu0 0.0
    %136 = vmatpush1.xpose.msra.mxu0 0.0
    %137 = vmatprep.subr.mxu0 0.0
    %138 = vmatpush1.xpose.msra.mxu0 0.0
    %139 = vmatprep.subr.mxu0 0.0
    %140 = vmatpush1.xpose.msra.mxu0 0.0
    %141 = vmatprep.subr.mxu0 0.0
    %142 = vmatpush1.xpose.msra.mxu0 0.0
    %143 = vmatprep.subr.mxu0 0.0
    %144 = vmatpush1.xpose.msra.mxu0 0.0
    %145 = vmatprep.mubr.f32.mxu0 0.0
    %v146 = vand.u32 %v66, 4294901760
    %v147 = vsub.f32 %v66, %v146
    %v148 = vand.u32 %v147, 4294901760
    %v149 = vsub.f32 %v147, %v148
    %v150 = vand.u32 %v149, 4294901760
    %151 = vmatmul.mubr.f32.gmra.mrb[0].mxu0 %v150
    %v152 = vpop.f32.mrb[0].mxu0
    %v153 = vadd.f32 %v47, %v152
    %v154 = vpop.f32.mrb[0].mxu0
    %155 = vmatprep.mubr.f32.mxu0 0.0
    %v156 = vand.u32 %v69, 4294901760
    %v157 = vsub.f32 %v69, %v156
    %v158 = vand.u32 %v157, 4294901760
    %v159 = vsub.f32 %v157, %v158
    %v160 = vand.u32 %v159, 4294901760
    %161 = vmatmul.mubr.f32.gmra.mrb[0].mxu0 %v160
    %v162 = vpop.f32.mrb[0].mxu0
    %v163 = vadd.f32 %v52, %v162
    %v164 = vpop.f32.mrb[0].mxu0
    %165 = vmatprep.mubr.f32.mxu0 0.0
    %v166 = vand.u32 %v72, 4294901760
    %v167 = vsub.f32 %v72, %v166
    %v168 = vand.u32 %v167, 4294901760
    %v169 = vsub.f32 %v167, %v168
    %v170 = vand.u32 %v169, 4294901760
    %171 = vmatmul.mubr.f32.gmra.mrb[0].mxu0 %v170
    %v172 = vpop.f32.mrb[0].mxu0
    %v173 = vadd.f32 %v57, %v172
    %v174 = vpop.f32.mrb[0].mxu0
    %175 = vmatprep.mubr.f32.mxu0 0.0
    %v176 = vand.u32 %v75, 4294901760
    %v177 = vsub.f32 %v75, %v176
    %v178 = vand.u32 %v177, 4294901760
    %v179 = vsub.f32 %v177, %v178
    %v180 = vand.u32 %v179, 4294901760
    %181 = vmatmul.mubr.f32.gmra.mrb[0].mxu0 %v180
    %v182 = vpop.f32.mrb[0].mxu0
    %v183 = vadd.f32 %v62, %v182
    %v184 = vpop.f32.mrb[0].mxu0
    %185 = vdwg.mxu0
    %186 = vmatprep.subr.mxu0 0.0
    %v187 = vand.u32 %v78, 4294901760
    %v188 = vsub.f32 %v78, %v187
    %v189 = vand.u32 %v188, 4294901760
    %v190 = vsub.f32 %v188, %v189
    %v191 = vand.u32 %v190, 4294901760
    %192 = vmatpush1.xpose.msra.mxu0 %v191
    %193 = vmatprep.subr.mxu0 0.0
    %194 = vmatpush1.xpose.msra.mxu0 0.0
    %195 = vmatprep.subr.mxu0 0.0
    %196 = vmatpush1.xpose.msra.mxu0 0.0
    %197 = vmatprep.subr.mxu0 0.0
    %198 = vmatpush1.xpose.msra.mxu0 0.0
    %199 = vmatprep.subr.mxu0 0.0
    %200 = vmatpush1.xpose.msra.mxu0 0.0
    %201 = vmatprep.subr.mxu0 0.0
    %202 = vmatpush1.xpose.msra.mxu0 0.0
    %203 = vmatprep.subr.mxu0 0.0
    %204 = vmatpush1.xpose.msra.mxu0 0.0
    %205 = vmatprep.subr.mxu0 0.0
    %206 = vmatpush1.xpose.msra.mxu0 0.0
    %207 = vmatprep.subr.mxu0 0.0
    %208 = vmatpush1.xpose.msra.mxu0 0.0
    %209 = vmatprep.subr.mxu0 0.0
    %210 = vmatpush1.xpose.msra.mxu0 0.0
    %211 = vmatprep.subr.mxu0 0.0
    %212 = vmatpush1.xpose.msra.mxu0 0.0
    %213 = vmatprep.subr.mxu0 0.0
    %214 = vmatpush1.xpose.msra.mxu0 0.0
    %215 = vmatprep.subr.mxu0 0.0
    %216 = vmatpush1.xpose.msra.mxu0 0.0
    %217 = vmatprep.subr.mxu0 0.0
    %218 = vmatpush1.xpose.msra.mxu0 0.0
    %219 = vmatprep.subr.mxu0 0.0
    %220 = vmatpush1.xpose.msra.mxu0 0.0
    %221 = vmatprep.subr.mxu0 0.0
    %222 = vmatpush1.xpose.msra.mxu0 0.0
    %223 = vmatprep.subr.mxu0 0.0
    %224 = vmatpush1.xpose.msra.mxu0 0.0
    %225 = vmatprep.subr.mxu0 0.0
    %226 = vmatpush1.xpose.msra.mxu0 0.0
    %227 = vmatprep.subr.mxu0 0.0
    %228 = vmatpush1.xpose.msra.mxu0 0.0
    %229 = vmatprep.subr.mxu0 0.0
    %230 = vmatpush1.xpose.msra.mxu0 0.0
    %231 = vmatprep.subr.mxu0 0.0
    %232 = vmatpush1.xpose.msra.mxu0 0.0
    %233 = vmatprep.subr.mxu0 0.0
    %234 = vmatpush1.xpose.msra.mxu0 0.0
    %235 = vmatprep.subr.mxu0 0.0
    %236 = vmatpush1.xpose.msra.mxu0 0.0
    %237 = vmatprep.subr.mxu0 0.0
    %238 = vmatpush1.xpose.msra.mxu0 0.0
    %239 = vmatprep.subr.mxu0 0.0
    %240 = vmatpush1.xpose.msra.mxu0 0.0
    %241 = vmatprep.subr.mxu0 0.0
    %242 = vmatpush1.xpose.msra.mxu0 0.0
    %243 = vmatprep.subr.mxu0 0.0
    %244 = vmatpush1.xpose.msra.mxu0 0.0
    %245 = vmatprep.subr.mxu0 0.0
    %246 = vmatpush1.xpose.msra.mxu0 0.0
    %247 = vmatprep.subr.mxu0 0.0
    %248 = vmatpush1.xpose.msra.mxu0 0.0
    %249 = vmatprep.subr.mxu0 0.0
    %250 = vmatpush1.xpose.msra.mxu0 0.0
    %251 = vmatprep.subr.mxu0 0.0
    %252 = vmatpush1.xpose.msra.mxu0 0.0
    %253 = vmatprep.subr.mxu0 0.0
    %254 = vmatpush1.xpose.msra.mxu0 0.0
    %255 = vmatprep.mubr.f32.mxu0 0.0
    %v256 = vand.u32 %v66, 4294901760
    %257 = vmatmul.mubr.f32.gmra.mrb[0].mxu0 %v256
    %v258 = vpop.f32.mrb[0].mxu0
    %v259 = vadd.f32 %v153, %v258
    %v260 = vpop.f32.mrb[0].mxu0
    %261 = vmatprep.mubr.f32.mxu0 0.0
    %v262 = vand.u32 %v69, 4294901760
    %263 = vmatmul.mubr.f32.gmra.mrb[0].mxu0 %v262
    %v264 = vpop.f32.mrb[0].mxu0
    %v265 = vadd.f32 %v163, %v264
    %v266 = vpop.f32.mrb[0].mxu0
    %267 = vmatprep.mubr.f32.mxu0 0.0
    %v268 = vand.u32 %v72, 4294901760
    %269 = vmatmul.mubr.f32.gmra.mrb[0].mxu0 %v268
    %v270 = vpop.f32.mrb[0].mxu0
    %v271 = vadd.f32 %v173, %v270
    %v272 = vpop.f32.mrb[0].mxu0
    %273 = vmatprep.mubr.f32.mxu0 0.0
    %v274 = vand.u32 %v75, 4294901760
    %275 = vmatmul.mubr.f32.gmra.mrb[0].mxu0 %v274
    %v276 = vpop.f32.mrb[0].mxu0
    %v277 = vadd.f32 %v183, %v276
    %v278 = vpop.f32.mrb[0].mxu0
    %279 = vdwg.mxu0
    %280 = vmatprep.subr.mxu0 0.0
    %v281 = vand.u32 %v78, 4294901760
    %v282 = vsub.f32 %v78, %v281
    %283 = vmatpush1.xpose.msra.mxu0 %v282
    %284 = vmatprep.subr.mxu0 0.0
    %285 = vmatpush1.xpose.msra.mxu0 0.0
    %286 = vmatprep.subr.mxu0 0.0
    %287 = vmatpush1.xpose.msra.mxu0 0.0
    %288 = vmatprep.subr.mxu0 0.0
    %289 = vmatpush1.xpose.msra.mxu0 0.0
    %290 = vmatprep.subr.mxu0 0.0
    %291 = vmatpush1.xpose.msra.mxu0 0.0
    %292 = vmatprep.subr.mxu0 0.0
    %293 = vmatpush1.xpose.msra.mxu0 0.0
    %294 = vmatprep.subr.mxu0 0.0
    %295 = vmatpush1.xpose.msra.mxu0 0.0
    %296 = vmatprep.subr.mxu0 0.0
    %297 = vmatpush1.xpose.msra.mxu0 0.0
    %298 = vmatprep.subr.mxu0 0.0
    %299 = vmatpush1.xpose.msra.mxu0 0.0
    %300 = vmatprep.subr.mxu0 0.0
    %301 = vmatpush1.xpose.msra.mxu0 0.0
    %302 = vmatprep.subr.mxu0 0.0
    %303 = vmatpush1.xpose.msra.mxu0 0.0
    %304 = vmatprep.subr.mxu0 0.0
    %305 = vmatpush1.xpose.msra.mxu0 0.0
    %306 = vmatprep.subr.mxu0 0.0
    %307 = vmatpush1.xpose.msra.mxu0 0.0
    %308 = vmatprep.subr.mxu0 0.0
    %309 = vmatpush1.xpose.msra.mxu0 0.0
    %310 = vmatprep.subr.mxu0 0.0
    %311 = vmatpush1.xpose.msra.mxu0 0.0
    %312 = vmatprep.subr.mxu0 0.0
    %313 = vmatpush1.xpose.msra.mxu0 0.0
    %314 = vmatprep.subr.mxu0 0.0
    %315 = vmatpush1.xpose.msra.mxu0 0.0
    %316 = vmatprep.subr.mxu0 0.0
    %317 = vmatpush1.xpose.msra.mxu0 0.0
    %318 = vmatprep.subr.mxu0 0.0
    %319 = vmatpush1.xpose.msra.mxu0 0.0
    %320 = vmatprep.subr.mxu0 0.0
    %321 = vmatpush1.xpose.msra.mxu0 0.0
    %322 = vmatprep.subr.mxu0 0.0
    %323 = vmatpush1.xpose.msra.mxu0 0.0
    %324 = vmatprep.subr.mxu0 0.0
    %325 = vmatpush1.xpose.msra.mxu0 0.0
    %326 = vmatprep.subr.mxu0 0.0
    %327 = vmatpush1.xpose.msra.mxu0 0.0
    %328 = vmatprep.subr.mxu0 0.0
    %329 = vmatpush1.xpose.msra.mxu0 0.0
    %330 = vmatprep.subr.mxu0 0.0
    %331 = vmatpush1.xpose.msra.mxu0 0.0
    %332 = vmatprep.subr.mxu0 0.0
    %333 = vmatpush1.xpose.msra.mxu0 0.0
    %334 = vmatprep.subr.mxu0 0.0
    %335 = vmatpush1.xpose.msra.mxu0 0.0
    %336 = vmatprep.subr.mxu0 0.0
    %337 = vmatpush1.xpose.msra.mxu0 0.0
    %338 = vmatprep.subr.mxu0 0.0
    %339 = vmatpush1.xpose.msra.mxu0 0.0
    %340 = vmatprep.subr.mxu0 0.0
    %341 = vmatpush1.xpose.msra.mxu0 0.0
    %342 = vmatprep.subr.mxu0 0.0
    %343 = vmatpush1.xpose.msra.mxu0 0.0
    %344 = vmatprep.subr.mxu0 0.0
    %345 = vmatpush1.xpose.msra.mxu0 0.0
    %346 = vmatprep.mubr.f32.mxu0 0.0
    %v347 = vand.u32 %v66, 4294901760
    %v348 = vsub.f32 %v66, %v347
    %349 = vmatmul.mubr.f32.gmra.mrb[0].mxu0 %v348
    %v350 = vpop.f32.mrb[0].mxu0
    %v351 = vadd.f32 %v259, %v350
    %v352 = vpop.f32.mrb[0].mxu0
    %353 = vmatprep.mubr.f32.mxu0 0.0
    %v354 = vand.u32 %v69, 4294901760
    %v355 = vsub.f32 %v69, %v354
    %356 = vmatmul.mubr.f32.gmra.mrb[0].mxu0 %v355
    %v357 = vpop.f32.mrb[0].mxu0
    %v358 = vadd.f32 %v265, %v357
    %v359 = vpop.f32.mrb[0].mxu0
    %360 = vmatprep.mubr.f32.mxu0 0.0
    %v361 = vand.u32 %v72, 4294901760
    %v362 = vsub.f32 %v72, %v361
    %363 = vmatmul.mubr.f32.gmra.mrb[0].mxu0 %v362
    %v364 = vpop.f32.mrb[0].mxu0
    %v365 = vadd.f32 %v271, %v364
    %v366 = vpop.f32.mrb[0].mxu0
    %367 = vmatprep.mubr.f32.mxu0 0.0
    %v368 = vand.u32 %v75, 4294901760
    %v369 = vsub.f32 %v75, %v368
    %370 = vmatmul.mubr.f32.gmra.mrb[0].mxu0 %v369
    %v371 = vpop.f32.mrb[0].mxu0
    %v372 = vadd.f32 %v277, %v371
    %v373 = vpop.f32.mrb[0].mxu0
    %374 = vdwg.mxu0
    %375 = vmatprep.subr.mxu0 0.0
    %v376 = vand.u32 %v78, 4294901760
    %377 = vmatpush1.xpose.msra.mxu0 %v376
    %378 = vmatprep.subr.mxu0 0.0
    %379 = vmatpush1.xpose.msra.mxu0 0.0
    %380 = vmatprep.subr.mxu0 0.0
    %381 = vmatpush1.xpose.msra.mxu0 0.0
    %382 = vmatprep.subr.mxu0 0.0
    %383 = vmatpush1.xpose.msra.mxu0 0.0
    %384 = vmatprep.subr.mxu0 0.0
    %385 = vmatpush1.xpose.msra.mxu0 0.0
    %386 = vmatprep.subr.mxu0 0.0
    %387 = vmatpush1.xpose.msra.mxu0 0.0
    %388 = vmatprep.subr.mxu0 0.0
    %389 = vmatpush1.xpose.msra.mxu0 0.0
    %390 = vmatprep.subr.mxu0 0.0
    %391 = vmatpush1.xpose.msra.mxu0 0.0
    %392 = vmatprep.subr.mxu0 0.0
    %393 = vmatpush1.xpose.msra.mxu0 0.0
    %394 = vmatprep.subr.mxu0 0.0
    %395 = vmatpush1.xpose.msra.mxu0 0.0
    %396 = vmatprep.subr.mxu0 0.0
    %397 = vmatpush1.xpose.msra.mxu0 0.0
    %398 = vmatprep.subr.mxu0 0.0
    %399 = vmatpush1.xpose.msra.mxu0 0.0
    %400 = vmatprep.subr.mxu0 0.0
    %401 = vmatpush1.xpose.msra.mxu0 0.0
    %402 = vmatprep.subr.mxu0 0.0
    %403 = vmatpush1.xpose.msra.mxu0 0.0
    %404 = vmatprep.subr.mxu0 0.0
    %405 = vmatpush1.xpose.msra.mxu0 0.0
    %406 = vmatprep.subr.mxu0 0.0
    %407 = vmatpush1.xpose.msra.mxu0 0.0
    %408 = vmatprep.subr.mxu0 0.0
    %409 = vmatpush1.xpose.msra.mxu0 0.0
    %410 = vmatprep.subr.mxu0 0.0
    %411 = vmatpush1.xpose.msra.mxu0 0.0
    %412 = vmatprep.subr.mxu0 0.0
    %413 = vmatpush1.xpose.msra.mxu0 0.0
    %414 = vmatprep.subr.mxu0 0.0
    %415 = vmatpush1.xpose.msra.mxu0 0.0
    %416 = vmatprep.subr.mxu0 0.0
    %417 = vmatpush1.xpose.msra.mxu0 0.0
    %418 = vmatprep.subr.mxu0 0.0
    %419 = vmatpush1.xpose.msra.mxu0 0.0
    %420 = vmatprep.subr.mxu0 0.0
    %421 = vmatpush1.xpose.msra.mxu0 0.0
    %422 = vmatprep.subr.mxu0 0.0
    %423 = vmatpush1.xpose.msra.mxu0 0.0
    %424 = vmatprep.subr.mxu0 0.0
    %425 = vmatpush1.xpose.msra.mxu0 0.0
    %426 = vmatprep.subr.mxu0 0.0
    %427 = vmatpush1.xpose.msra.mxu0 0.0
    %428 = vmatprep.subr.mxu0 0.0
    %429 = vmatpush1.xpose.msra.mxu0 0.0
    %430 = vmatprep.subr.mxu0 0.0
    %431 = vmatpush1.xpose.msra.mxu0 0.0
    %432 = vmatprep.subr.mxu0 0.0
    %433 = vmatpush1.xpose.msra.mxu0 0.0
    %434 = vmatprep.subr.mxu0 0.0
    %435 = vmatpush1.xpose.msra.mxu0 0.0
    %436 = vmatprep.subr.mxu0 0.0
    %437 = vmatpush1.xpose.msra.mxu0 0.0
    %438 = vmatprep.subr.mxu0 0.0
    %439 = vmatpush1.xpose.msra.mxu0 0.0
    %440 = vmatprep.mubr.f32.mxu0 0.0
    %v441 = vand.u32 %v66, 4294901760
    %v442 = vsub.f32 %v66, %v441
    %v443 = vand.u32 %v442, 4294901760
    %444 = vmatmul.mubr.f32.gmra.mrb[0].mxu0 %v443
    %v445 = vpop.f32.mrb[0].mxu0
    %v446 = vadd.f32 %v351, %v445
    %v447 = vpop.f32.mrb[0].mxu0
    %448 = vmatprep.mubr.f32.mxu0 0.0
    %v449 = vand.u32 %v69, 4294901760
    %v450 = vsub.f32 %v69, %v449
    %v451 = vand.u32 %v450, 4294901760
    %452 = vmatmul.mubr.f32.gmra.mrb[0].mxu0 %v451
    %v453 = vpop.f32.mrb[0].mxu0
    %v454 = vadd.f32 %v358, %v453
    %v455 = vpop.f32.mrb[0].mxu0
    %456 = vmatprep.mubr.f32.mxu0 0.0
    %v457 = vand.u32 %v72, 4294901760
    %v458 = vsub.f32 %v72, %v457
    %v459 = vand.u32 %v458, 4294901760
    %460 = vmatmul.mubr.f32.gmra.mrb[0].mxu0 %v459
    %v461 = vpop.f32.mrb[0].mxu0
    %v462 = vadd.f32 %v365, %v461
    %v463 = vpop.f32.mrb[0].mxu0
    %464 = vmatprep.mubr.f32.mxu0 0.0
    %v465 = vand.u32 %v75, 4294901760
    %v466 = vsub.f32 %v75, %v465
    %v467 = vand.u32 %v466, 4294901760
    %468 = vmatmul.mubr.f32.gmra.mrb[0].mxu0 %v467
    %v469 = vpop.f32.mrb[0].mxu0
    %v470 = vadd.f32 %v372, %v469
    %v471 = vpop.f32.mrb[0].mxu0
    %472 = vdwg.mxu0
    %473 = vmatprep.subr.mxu0 0.0
    %v474 = vand.u32 %v78, 4294901760
    %v475 = vsub.f32 %v78, %v474
    %v476 = vand.u32 %v475, 4294901760
    %477 = vmatpush1.xpose.msra.mxu0 %v476
    %478 = vmatprep.subr.mxu0 0.0
    %479 = vmatpush1.xpose.msra.mxu0 0.0
    %480 = vmatprep.subr.mxu0 0.0
    %481 = vmatpush1.xpose.msra.mxu0 0.0
    %482 = vmatprep.subr.mxu0 0.0
    %483 = vmatpush1.xpose.msra.mxu0 0.0
    %484 = vmatprep.subr.mxu0 0.0
    %485 = vmatpush1.xpose.msra.mxu0 0.0
    %486 = vmatprep.subr.mxu0 0.0
    %487 = vmatpush1.xpose.msra.mxu0 0.0
    %488 = vmatprep.subr.mxu0 0.0
    %489 = vmatpush1.xpose.msra.mxu0 0.0
    %490 = vmatprep.subr.mxu0 0.0
    %491 = vmatpush1.xpose.msra.mxu0 0.0
    %492 = vmatprep.subr.mxu0 0.0
    %493 = vmatpush1.xpose.msra.mxu0 0.0
    %494 = vmatprep.subr.mxu0 0.0
    %495 = vmatpush1.xpose.msra.mxu0 0.0
    %496 = vmatprep.subr.mxu0 0.0
    %497 = vmatpush1.xpose.msra.mxu0 0.0
    %498 = vmatprep.subr.mxu0 0.0
    %499 = vmatpush1.xpose.msra.mxu0 0.0
    %500 = vmatprep.subr.mxu0 0.0
    %501 = vmatpush1.xpose.msra.mxu0 0.0
    %502 = vmatprep.subr.mxu0 0.0
    %503 = vmatpush1.xpose.msra.mxu0 0.0
    %504 = vmatprep.subr.mxu0 0.0
    %505 = vmatpush1.xpose.msra.mxu0 0.0
    %506 = vmatprep.subr.mxu0 0.0
    %507 = vmatpush1.xpose.msra.mxu0 0.0
    %508 = vmatprep.subr.mxu0 0.0
    %509 = vmatpush1.xpose.msra.mxu0 0.0
    %510 = vmatprep.subr.mxu0 0.0
    %511 = vmatpush1.xpose.msra.mxu0 0.0
    %512 = vmatprep.subr.mxu0 0.0
    %513 = vmatpush1.xpose.msra.mxu0 0.0
    %514 = vmatprep.subr.mxu0 0.0
    %515 = vmatpush1.xpose.msra.mxu0 0.0
    %516 = vmatprep.subr.mxu0 0.0
    %517 = vmatpush1.xpose.msra.mxu0 0.0
    %518 = vmatprep.subr.mxu0 0.0
    %519 = vmatpush1.xpose.msra.mxu0 0.0
    %520 = vmatprep.subr.mxu0 0.0
    %521 = vmatpush1.xpose.msra.mxu0 0.0
    %522 = vmatprep.subr.mxu0 0.0
    %523 = vmatpush1.xpose.msra.mxu0 0.0
    %524 = vmatprep.subr.mxu0 0.0
    %525 = vmatpush1.xpose.msra.mxu0 0.0
    %526 = vmatprep.subr.mxu0 0.0
    %527 = vmatpush1.xpose.msra.mxu0 0.0
    %528 = vmatprep.subr.mxu0 0.0
    %529 = vmatpush1.xpose.msra.mxu0 0.0
    %530 = vmatprep.subr.mxu0 0.0
    %531 = vmatpush1.xpose.msra.mxu0 0.0
    %532 = vmatprep.subr.mxu0 0.0
    %533 = vmatpush1.xpose.msra.mxu0 0.0
    %534 = vmatprep.subr.mxu0 0.0
    %535 = vmatpush1.xpose.msra.mxu0 0.0
    %536 = vmatprep.subr.mxu0 0.0
    %537 = vmatpush1.xpose.msra.mxu0 0.0
    %538 = vmatprep.subr.mxu0 0.0
    %539 = vmatpush1.xpose.msra.mxu0 0.0
    %540 = vmatprep.mubr.f32.mxu0 0.0
    %v541 = vand.u32 %v66, 4294901760
    %542 = vmatmul.mubr.f32.gmra.mrb[0].mxu0 %v541
    %v543 = vpop.f32.mrb[0].mxu0
    %v544 = vadd.f32 %v446, %v543
    %v545 = vpop.f32.mrb[0].mxu0
    %546 = vmatprep.mubr.f32.mxu0 0.0
    %v547 = vand.u32 %v69, 4294901760
    %548 = vmatmul.mubr.f32.gmra.mrb[0].mxu0 %v547
    %v549 = vpop.f32.mrb[0].mxu0
    %v550 = vadd.f32 %v454, %v549
    %v551 = vpop.f32.mrb[0].mxu0
    %552 = vmatprep.mubr.f32.mxu0 0.0
    %v553 = vand.u32 %v72, 4294901760
    %554 = vmatmul.mubr.f32.gmra.mrb[0].mxu0 %v553
    %v555 = vpop.f32.mrb[0].mxu0
    %v556 = vadd.f32 %v462, %v555
    %v557 = vpop.f32.mrb[0].mxu0
    %558 = vmatprep.mubr.f32.mxu0 0.0
    %v559 = vand.u32 %v75, 4294901760
    %560 = vmatmul.mubr.f32.gmra.mrb[0].mxu0 %v559
    %v561 = vpop.f32.mrb[0].mxu0
    %v562 = vadd.f32 %v470, %v561
    %v563 = vpop.f32.mrb[0].mxu0
    %564 = vdwg.mxu0
    %565 = vmatprep.subr.mxu0 0.0
    %v566 = vand.u32 %v78, 4294901760
    %567 = vmatpush1.xpose.msra.mxu0 %v566
    %568 = vmatprep.subr.mxu0 0.0
    %569 = vmatpush1.xpose.msra.mxu0 0.0
    %570 = vmatprep.subr.mxu0 0.0
    %571 = vmatpush1.xpose.msra.mxu0 0.0
    %572 = vmatprep.subr.mxu0 0.0
    %573 = vmatpush1.xpose.msra.mxu0 0.0
    %574 = vmatprep.subr.mxu0 0.0
    %575 = vmatpush1.xpose.msra.mxu0 0.0
    %576 = vmatprep.subr.mxu0 0.0
    %577 = vmatpush1.xpose.msra.mxu0 0.0
    %578 = vmatprep.subr.mxu0 0.0
    %579 = vmatpush1.xpose.msra.mxu0 0.0
    %580 = vmatprep.subr.mxu0 0.0
    %581 = vmatpush1.xpose.msra.mxu0 0.0
    %582 = vmatprep.subr.mxu0 0.0
    %583 = vmatpush1.xpose.msra.mxu0 0.0
    %584 = vmatprep.subr.mxu0 0.0
    %585 = vmatpush1.xpose.msra.mxu0 0.0
    %586 = vmatprep.subr.mxu0 0.0
    %587 = vmatpush1.xpose.msra.mxu0 0.0
    %588 = vmatprep.subr.mxu0 0.0
    %589 = vmatpush1.xpose.msra.mxu0 0.0
    %590 = vmatprep.subr.mxu0 0.0
    %591 = vmatpush1.xpose.msra.mxu0 0.0
    %592 = vmatprep.subr.mxu0 0.0
    %593 = vmatpush1.xpose.msra.mxu0 0.0
    %594 = vmatprep.subr.mxu0 0.0
    %595 = vmatpush1.xpose.msra.mxu0 0.0
    %596 = vmatprep.subr.mxu0 0.0
    %597 = vmatpush1.xpose.msra.mxu0 0.0
    %598 = vmatprep.subr.mxu0 0.0
    %599 = vmatpush1.xpose.msra.mxu0 0.0
    %600 = vmatprep.subr.mxu0 0.0
    %601 = vmatpush1.xpose.msra.mxu0 0.0
    %602 = vmatprep.subr.mxu0 0.0
    %603 = vmatpush1.xpose.msra.mxu0 0.0
    %604 = vmatprep.subr.mxu0 0.0
    %605 = vmatpush1.xpose.msra.mxu0 0.0
    %606 = vmatprep.subr.mxu0 0.0
    %607 = vmatpush1.xpose.msra.mxu0 0.0
    %608 = vmatprep.subr.mxu0 0.0
    %609 = vmatpush1.xpose.msra.mxu0 0.0
    %610 = vmatprep.subr.mxu0 0.0
    %611 = vmatpush1.xpose.msra.mxu0 0.0
    %612 = vmatprep.subr.mxu0 0.0
    %613 = vmatpush1.xpose.msra.mxu0 0.0
    %614 = vmatprep.subr.mxu0 0.0
    %615 = vmatpush1.xpose.msra.mxu0 0.0
    %616 = vmatprep.subr.mxu0 0.0
    %617 = vmatpush1.xpose.msra.mxu0 0.0
    %618 = vmatprep.subr.mxu0 0.0
    %619 = vmatpush1.xpose.msra.mxu0 0.0
    %620 = vmatprep.subr.mxu0 0.0
    %621 = vmatpush1.xpose.msra.mxu0 0.0
    %622 = vmatprep.subr.mxu0 0.0
    %623 = vmatpush1.xpose.msra.mxu0 0.0
    %624 = vmatprep.subr.mxu0 0.0
    %625 = vmatpush1.xpose.msra.mxu0 0.0
    %626 = vmatprep.subr.mxu0 0.0
    %627 = vmatpush1.xpose.msra.mxu0 0.0
    %628 = vmatprep.subr.mxu0 0.0
    %629 = vmatpush1.xpose.msra.mxu0 0.0
    %630 = vmatprep.mubr.f32.mxu0 0.0
    %v631 = vand.u32 %v66, 4294901760
    %632 = vmatmul.mubr.f32.gmra.mrb[0].mxu0 %v631
    %v633 = vpop.f32.mrb[0].mxu0
    %v634 = vadd.f32 %v544, %v633
    %v635 = vpop.f32.mrb[0].mxu0
    %636 = vmatprep.mubr.f32.mxu0 0.0
    %v637 = vand.u32 %v69, 4294901760
    %638 = vmatmul.mubr.f32.gmra.mrb[0].mxu0 %v637
    %v639 = vpop.f32.mrb[0].mxu0
    %v640 = vadd.f32 %v550, %v639
    %v641 = vpop.f32.mrb[0].mxu0
    %642 = vmatprep.mubr.f32.mxu0 0.0
    %v643 = vand.u32 %v72, 4294901760
    %644 = vmatmul.mubr.f32.gmra.mrb[0].mxu0 %v643
    %v645 = vpop.f32.mrb[0].mxu0
    %v646 = vadd.f32 %v556, %v645
    %v647 = vpop.f32.mrb[0].mxu0
    %648 = vmatprep.mubr.f32.mxu0 0.0
    %v649 = vand.u32 %v75, 4294901760
    %650 = vmatmul.mubr.f32.gmra.mrb[0].mxu0 %v649
    %v651 = vpop.f32.mrb[0].mxu0
    %v652 = vadd.f32 %v562, %v651
    %v653 = vpop.f32.mrb[0].mxu0
    %654 = vdwg.mxu0
    %v655 = vmax.f32 %v634, 0.0
    %v656 = vmax.f32 %v640, 0.0
    %v657 = vmax.f32 %v646, 0.0
    %v658 = vmax.f32 %v652, 0.0
    %v659 = vld [vmem:[%s3] sm:$0xff]
    %v660 = vld [vmem:[%s3 + $0x8] sm:$0xff]
    %v661 = vld [vmem:[%s4] sm:$0xff]
    %v662 = vld [vmem:[%s4 + $0x8] sm:$0xff]
    %664 = vset.pattern.permute.xlu0 0
    %665 = vperm.xlu0 %664, %v661
    %v666 = vpop.permute.xlu0 %665
    %669 = vset.pattern.permute.xlu0 0
    %670 = vperm.xlu0 %669, %v662
    %v671 = vpop.permute.xlu0 %670
    %vm673 = vcmask 261120
    %v675 = vsel %vm673, %v659, 0
    %v678 = vsel %vm673, %v660, 0
    %680 = vmatprep.subr.mxu0 0.0
    %v681 = vand.u32 %v655, 4294901760
    %682 = vmatpush1.msra.mxu0 %v681
    %683 = vmatprep.subr.mxu0 0.0
    %v684 = vand.u32 %v656, 4294901760
    %685 = vmatpush1.msra.mxu0 %v684
    %686 = vmatprep.subr.mxu0 0.0
    %v687 = vand.u32 %v657, 4294901760
    %688 = vmatpush1.msra.mxu0 %v687
    %689 = vmatprep.subr.mxu0 0.0
    %v690 = vand.u32 %v658, 4294901760
    %691 = vmatpush1.msra.mxu0 %v690
    %692 = vmatprep.subr.mxu0 0.0
    %693 = vmatpush1.msra.mxu0 0.0
    %694 = vmatprep.subr.mxu0 0.0
    %695 = vmatpush1.msra.mxu0 0.0
    %696 = vmatprep.subr.mxu0 0.0
    %697 = vmatpush1.msra.mxu0 0.0
    %698 = vmatprep.subr.mxu0 0.0
    %699 = vmatpush1.msra.mxu0 0.0
    %700 = vmatprep.subr.mxu0 0.0
    %701 = vmatpush1.msra.mxu0 0.0
    %702 = vmatprep.subr.mxu0 0.0
    %703 = vmatpush1.msra.mxu0 0.0
    %704 = vmatprep.subr.mxu0 0.0
    %705 = vmatpush1.msra.mxu0 0.0
    %706 = vmatprep.subr.mxu0 0.0
    %707 = vmatpush1.msra.mxu0 0.0
    %708 = vmatprep.subr.mxu0 0.0
    %709 = vmatpush1.msra.mxu0 0.0
    %710 = vmatprep.subr.mxu0 0.0
    %711 = vmatpush1.msra.mxu0 0.0
    %712 = vmatprep.subr.mxu0 0.0
    %713 = vmatpush1.msra.mxu0 0.0
    %714 = vmatprep.subr.mxu0 0.0
    %715 = vmatpush1.msra.mxu0 0.0
    %716 = vmatprep.subr.mxu0 0.0
    %717 = vmatpush1.msra.mxu0 0.0
    %718 = vmatprep.subr.mxu0 0.0
    %719 = vmatpush1.msra.mxu0 0.0
    %720 = vmatprep.subr.mxu0 0.0
    %721 = vmatpush1.msra.mxu0 0.0
    %722 = vmatprep.subr.mxu0 0.0
    %723 = vmatpush1.msra.mxu0 0.0
    %724 = vmatprep.subr.mxu0 0.0
    %725 = vmatpush1.msra.mxu0 0.0
    %726 = vmatprep.subr.mxu0 0.0
    %727 = vmatpush1.msra.mxu0 0.0
    %728 = vmatprep.subr.mxu0 0.0
    %729 = vmatpush1.msra.mxu0 0.0
    %730 = vmatprep.subr.mxu0 0.0
    %731 = vmatpush1.msra.mxu0 0.0
    %732 = vmatprep.subr.mxu0 0.0
    %733 = vmatpush1.msra.mxu0 0.0
    %734 = vmatprep.subr.mxu0 0.0
    %735 = vmatpush1.msra.mxu0 0.0
    %736 = vmatprep.subr.mxu0 0.0
    %737 = vmatpush1.msra.mxu0 0.0
    %738 = vmatprep.subr.mxu0 0.0
    %739 = vmatpush1.msra.mxu0 0.0
    %740 = vmatprep.subr.mxu0 0.0
    %741 = vmatpush1.msra.mxu0 0.0
    %742 = vmatprep.subr.mxu0 0.0
    %743 = vmatpush1.msra.mxu0 0.0
    %744 = vmatprep.subr.mxu0 0.0
    %745 = vmatpush1.msra.mxu0 0.0
    %746 = vmatprep.subr.mxu0 0.0
    %747 = vmatpush1.msra.mxu0 0.0
    %748 = vmatprep.mubr.f32.mxu0 0.0
    %v749 = vand.u32 %v675, 4294901760
    %v750 = vsub.f32 %v675, %v749
    %v751 = vand.u32 %v750, 4294901760
    %v752 = vsub.f32 %v750, %v751
    %v753 = vand.u32 %v752, 4294901760
    %754 = vmatmul.mubr.f32.gmra.mrb[0].mxu0 %v753
    %v755 = vpop.f32.mrb[0].mxu0
    %v756 = vadd.f32 %v666, %v755
    %v757 = vpop.f32.mrb[0].mxu0
    %758 = vmatprep.mubr.f32.mxu0 0.0
    %v759 = vand.u32 %v678, 4294901760
    %v760 = vsub.f32 %v678, %v759
    %v761 = vand.u32 %v760, 4294901760
    %v762 = vsub.f32 %v760, %v761
    %v763 = vand.u32 %v762, 4294901760
    %764 = vmatmul.mubr.f32.gmra.mrb[0].mxu0 %v763
    %v765 = vpop.f32.mrb[0].mxu0
    %v766 = vadd.f32 %v671, %v765
    %v767 = vpop.f32.mrb[0].mxu0
    %768 = vdwg.mxu0
    %769 = vmatprep.subr.mxu0 0.0
    %v770 = vand.u32 %v655, 4294901760
    %v771 = vsub.f32 %v655, %v770
    %v772 = vand.u32 %v771, 4294901760
    %v773 = vsub.f32 %v771, %v772
    %v774 = vand.u32 %v773, 4294901760
    %775 = vmatpush1.msra.mxu0 %v774
    %776 = vmatprep.subr.mxu0 0.0
    %v777 = vand.u32 %v656, 4294901760
    %v778 = vsub.f32 %v656, %v777
    %v779 = vand.u32 %v778, 4294901760
    %v780 = vsub.f32 %v778, %v779
    %v781 = vand.u32 %v780, 4294901760
    %782 = vmatpush1.msra.mxu0 %v781
    %783 = vmatprep.subr.mxu0 0.0
    %v784 = vand.u32 %v657, 4294901760
    %v785 = vsub.f32 %v657, %v784
    %v786 = vand.u32 %v785, 4294901760
    %v787 = vsub.f32 %v785, %v786
    %v788 = vand.u32 %v787, 4294901760
    %789 = vmatpush1.msra.mxu0 %v788
    %790 = vmatprep.subr.mxu0 0.0
    %v791 = vand.u32 %v658, 4294901760
    %v792 = vsub.f32 %v658, %v791
    %v793 = vand.u32 %v792, 4294901760
    %v794 = vsub.f32 %v792, %v793
    %v795 = vand.u32 %v794, 4294901760
    %796 = vmatpush1.msra.mxu0 %v795
    %797 = vmatprep.subr.mxu0 0.0
    %798 = vmatpush1.msra.mxu0 0.0
    %799 = vmatprep.subr.mxu0 0.0
    %800 = vmatpush1.msra.mxu0 0.0
    %801 = vmatprep.subr.mxu0 0.0
    %802 = vmatpush1.msra.mxu0 0.0
    %803 = vmatprep.subr.mxu0 0.0
    %804 = vmatpush1.msra.mxu0 0.0
    %805 = vmatprep.subr.mxu0 0.0
    %806 = vmatpush1.msra.mxu0 0.0
    %807 = vmatprep.subr.mxu0 0.0
    %808 = vmatpush1.msra.mxu0 0.0
    %809 = vmatprep.subr.mxu0 0.0
    %810 = vmatpush1.msra.mxu0 0.0
    %811 = vmatprep.subr.mxu0 0.0
    %812 = vmatpush1.msra.mxu0 0.0
    %813 = vmatprep.subr.mxu0 0.0
    %814 = vmatpush1.msra.mxu0 0.0
    %815 = vmatprep.subr.mxu0 0.0
    %816 = vmatpush1.msra.mxu0 0.0
    %817 = vmatprep.subr.mxu0 0.0
    %818 = vmatpush1.msra.mxu0 0.0
    %819 = vmatprep.subr.mxu0 0.0
    %820 = vmatpush1.msra.mxu0 0.0
    %821 = vmatprep.subr.mxu0 0.0
    %822 = vmatpush1.msra.mxu0 0.0
    %823 = vmatprep.subr.mxu0 0.0
    %824 = vmatpush1.msra.mxu0 0.0
    %825 = vmatprep.subr.mxu0 0.0
    %826 = vmatpush1.msra.mxu0 0.0
    %827 = vmatprep.subr.mxu0 0.0
    %828 = vmatpush1.msra.mxu0 0.0
    %829 = vmatprep.subr.mxu0 0.0
    %830 = vmatpush1.msra.mxu0 0.0
    %831 = vmatprep.subr.mxu0 0.0
    %832 = vmatpush1.msra.mxu0 0.0
    %833 = vmatprep.subr.mxu0 0.0
    %834 = vmatpush1.msra.mxu0 0.0
    %835 = vmatprep.subr.mxu0 0.0
    %836 = vmatpush1.msra.mxu0 0.0
    %837 = vmatprep.subr.mxu0 0.0
    %838 = vmatpush1.msra.mxu0 0.0
    %839 = vmatprep.subr.mxu0 0.0
    %840 = vmatpush1.msra.mxu0 0.0
    %841 = vmatprep.subr.mxu0 0.0
    %842 = vmatpush1.msra.mxu0 0.0
    %843 = vmatprep.subr.mxu0 0.0
    %844 = vmatpush1.msra.mxu0 0.0
    %845 = vmatprep.subr.mxu0 0.0
    %846 = vmatpush1.msra.mxu0 0.0
    %847 = vmatprep.subr.mxu0 0.0
    %848 = vmatpush1.msra.mxu0 0.0
    %849 = vmatprep.subr.mxu0 0.0
    %850 = vmatpush1.msra.mxu0 0.0
    %851 = vmatprep.subr.mxu0 0.0
    %852 = vmatpush1.msra.mxu0 0.0
    %853 = vmatprep.mubr.f32.mxu0 0.0
    %v854 = vand.u32 %v675, 4294901760
    %855 = vmatmul.mubr.f32.gmra.mrb[0].mxu0 %v854
    %v856 = vpop.f32.mrb[0].mxu0
    %v857 = vadd.f32 %v756, %v856
    %v858 = vpop.f32.mrb[0].mxu0
    %859 = vmatprep.mubr.f32.mxu0 0.0
    %v860 = vand.u32 %v678, 4294901760
    %861 = vmatmul.mubr.f32.gmra.mrb[0].mxu0 %v860
    %v862 = vpop.f32.mrb[0].mxu0
    %v863 = vadd.f32 %v766, %v862
    %v864 = vpop.f32.mrb[0].mxu0
    %865 = vdwg.mxu0
    %866 = vmatprep.subr.mxu0 0.0
    %v867 = vand.u32 %v655, 4294901760
    %v868 = vsub.f32 %v655, %v867
    %869 = vmatpush1.msra.mxu0 %v868
    %870 = vmatprep.subr.mxu0 0.0
    %v871 = vand.u32 %v656, 4294901760
    %v872 = vsub.f32 %v656, %v871
    %873 = vmatpush1.msra.mxu0 %v872
    %874 = vmatprep.subr.mxu0 0.0
    %v875 = vand.u32 %v657, 4294901760
    %v876 = vsub.f32 %v657, %v875
    %877 = vmatpush1.msra.mxu0 %v876
    %878 = vmatprep.subr.mxu0 0.0
    %v879 = vand.u32 %v658, 4294901760
    %v880 = vsub.f32 %v658, %v879
    %881 = vmatpush1.msra.mxu0 %v880
    %882 = vmatprep.subr.mxu0 0.0
    %883 = vmatpush1.msra.mxu0 0.0
    %884 = vmatprep.subr.mxu0 0.0
    %885 = vmatpush1.msra.mxu0 0.0
    %886 = vmatprep.subr.mxu0 0.0
    %887 = vmatpush1.msra.mxu0 0.0
    %888 = vmatprep.subr.mxu0 0.0
    %889 = vmatpush1.msra.mxu0 0.0
    %890 = vmatprep.subr.mxu0 0.0
    %891 = vmatpush1.msra.mxu0 0.0
    %892 = vmatprep.subr.mxu0 0.0
    %893 = vmatpush1.msra.mxu0 0.0
    %894 = vmatprep.subr.mxu0 0.0
    %895 = vmatpush1.msra.mxu0 0.0
    %896 = vmatprep.subr.mxu0 0.0
    %897 = vmatpush1.msra.mxu0 0.0
    %898 = vmatprep.subr.mxu0 0.0
    %899 = vmatpush1.msra.mxu0 0.0
    %900 = vmatprep.subr.mxu0 0.0
    %901 = vmatpush1.msra.mxu0 0.0
    %902 = vmatprep.subr.mxu0 0.0
    %903 = vmatpush1.msra.mxu0 0.0
    %904 = vmatprep.subr.mxu0 0.0
    %905 = vmatpush1.msra.mxu0 0.0
    %906 = vmatprep.subr.mxu0 0.0
    %907 = vmatpush1.msra.mxu0 0.0
    %908 = vmatprep.subr.mxu0 0.0
    %909 = vmatpush1.msra.mxu0 0.0
    %910 = vmatprep.subr.mxu0 0.0
    %911 = vmatpush1.msra.mxu0 0.0
    %912 = vmatprep.subr.mxu0 0.0
    %913 = vmatpush1.msra.mxu0 0.0
    %914 = vmatprep.subr.mxu0 0.0
    %915 = vmatpush1.msra.mxu0 0.0
    %916 = vmatprep.subr.mxu0 0.0
    %917 = vmatpush1.msra.mxu0 0.0
    %918 = vmatprep.subr.mxu0 0.0
    %919 = vmatpush1.msra.mxu0 0.0
    %920 = vmatprep.subr.mxu0 0.0
    %921 = vmatpush1.msra.mxu0 0.0
    %922 = vmatprep.subr.mxu0 0.0
    %923 = vmatpush1.msra.mxu0 0.0
    %924 = vmatprep.subr.mxu0 0.0
    %925 = vmatpush1.msra.mxu0 0.0
    %926 = vmatprep.subr.mxu0 0.0
    %927 = vmatpush1.msra.mxu0 0.0
    %928 = vmatprep.subr.mxu0 0.0
    %929 = vmatpush1.msra.mxu0 0.0
    %930 = vmatprep.subr.mxu0 0.0
    %931 = vmatpush1.msra.mxu0 0.0
    %932 = vmatprep.subr.mxu0 0.0
    %933 = vmatpush1.msra.mxu0 0.0
    %934 = vmatprep.subr.mxu0 0.0
    %935 = vmatpush1.msra.mxu0 0.0
    %936 = vmatprep.subr.mxu0 0.0
    %937 = vmatpush1.msra.mxu0 0.0
    %938 = vmatprep.mubr.f32.mxu0 0.0
    %v939 = vand.u32 %v675, 4294901760
    %v940 = vsub.f32 %v675, %v939
    %941 = vmatmul.mubr.f32.gmra.mrb[0].mxu0 %v940
    %v942 = vpop.f32.mrb[0].mxu0
    %v943 = vadd.f32 %v857, %v942
    %v944 = vpop.f32.mrb[0].mxu0
    %945 = vmatprep.mubr.f32.mxu0 0.0
    %v946 = vand.u32 %v678, 4294901760
    %v947 = vsub.f32 %v678, %v946
    %948 = vmatmul.mubr.f32.gmra.mrb[0].mxu0 %v947
    %v949 = vpop.f32.mrb[0].mxu0
    %v950 = vadd.f32 %v863, %v949
    %v951 = vpop.f32.mrb[0].mxu0
    %952 = vdwg.mxu0
    %953 = vmatprep.subr.mxu0 0.0
    %v954 = vand.u32 %v655, 4294901760
    %955 = vmatpush1.msra.mxu0 %v954
    %956 = vmatprep.subr.mxu0 0.0
    %v957 = vand.u32 %v656, 4294901760
    %958 = vmatpush1.msra.mxu0 %v957
    %959 = vmatprep.subr.mxu0 0.0
    %v960 = vand.u32 %v657, 4294901760
    %961 = vmatpush1.msra.mxu0 %v960
    %962 = vmatprep.subr.mxu0 0.0
    %v963 = vand.u32 %v658, 4294901760
    %964 = vmatpush1.msra.mxu0 %v963
    %965 = vmatprep.subr.mxu0 0.0
    %966 = vmatpush1.msra.mxu0 0.0
    %967 = vmatprep.subr.mxu0 0.0
    %968 = vmatpush1.msra.mxu0 0.0
    %969 = vmatprep.subr.mxu0 0.0
    %970 = vmatpush1.msra.mxu0 0.0
    %971 = vmatprep.subr.mxu0 0.0
    %972 = vmatpush1.msra.mxu0 0.0
    %973 = vmatprep.subr.mxu0 0.0
    %974 = vmatpush1.msra.mxu0 0.0
    %975 = vmatprep.subr.mxu0 0.0
    %976 = vmatpush1.msra.mxu0 0.0
    %977 = vmatprep.subr.mxu0 0.0
    %978 = vmatpush1.msra.mxu0 0.0
    %979 = vmatprep.subr.mxu0 0.0
    %980 = vmatpush1.msra.mxu0 0.0
    %981 = vmatprep.subr.mxu0 0.0
    %982 = vmatpush1.msra.mxu0 0.0
    %983 = vmatprep.subr.mxu0 0.0
    %984 = vmatpush1.msra.mxu0 0.0
    %985 = vmatprep.subr.mxu0 0.0
    %986 = vmatpush1.msra.mxu0 0.0
    %987 = vmatprep.subr.mxu0 0.0
    %988 = vmatpush1.msra.mxu0 0.0
    %989 = vmatprep.subr.mxu0 0.0
    %990 = vmatpush1.msra.mxu0 0.0
    %991 = vmatprep.subr.mxu0 0.0
    %992 = vmatpush1.msra.mxu0 0.0
    %993 = vmatprep.subr.mxu0 0.0
    %994 = vmatpush1.msra.mxu0 0.0
    %995 = vmatprep.subr.mxu0 0.0
    %996 = vmatpush1.msra.mxu0 0.0
    %997 = vmatprep.subr.mxu0 0.0
    %998 = vmatpush1.msra.mxu0 0.0
    %999 = vmatprep.subr.mxu0 0.0
    %1000 = vmatpush1.msra.mxu0 0.0
    %1001 = vmatprep.subr.mxu0 0.0
    %1002 = vmatpush1.msra.mxu0 0.0
    %1003 = vmatprep.subr.mxu0 0.0
    %1004 = vmatpush1.msra.mxu0 0.0
    %1005 = vmatprep.subr.mxu0 0.0
    %1006 = vmatpush1.msra.mxu0 0.0
    %1007 = vmatprep.subr.mxu0 0.0
    %1008 = vmatpush1.msra.mxu0 0.0
    %1009 = vmatprep.subr.mxu0 0.0
    %1010 = vmatpush1.msra.mxu0 0.0
    %1011 = vmatprep.subr.mxu0 0.0
    %1012 = vmatpush1.msra.mxu0 0.0
    %1013 = vmatprep.subr.mxu0 0.0
    %1014 = vmatpush1.msra.mxu0 0.0
    %1015 = vmatprep.subr.mxu0 0.0
    %1016 = vmatpush1.msra.mxu0 0.0
    %1017 = vmatprep.subr.mxu0 0.0
    %1018 = vmatpush1.msra.mxu0 0.0
    %1019 = vmatprep.subr.mxu0 0.0
    %1020 = vmatpush1.msra.mxu0 0.0
    %1021 = vmatprep.mubr.f32.mxu0 0.0
    %v1022 = vand.u32 %v675, 4294901760
    %v1023 = vsub.f32 %v675, %v1022
    %v1024 = vand.u32 %v1023, 4294901760
    %1025 = vmatmul.mubr.f32.gmra.mrb[0].mxu0 %v1024
    %v1026 = vpop.f32.mrb[0].mxu0
    %v1027 = vadd.f32 %v943, %v1026
    %v1028 = vpop.f32.mrb[0].mxu0
    %1029 = vmatprep.mubr.f32.mxu0 0.0
    %v1030 = vand.u32 %v678, 4294901760
    %v1031 = vsub.f32 %v678, %v1030
    %v1032 = vand.u32 %v1031, 4294901760
    %1033 = vmatmul.mubr.f32.gmra.mrb[0].mxu0 %v1032
    %v1034 = vpop.f32.mrb[0].mxu0
    %v1035 = vadd.f32 %v950, %v1034
    %v1036 = vpop.f32.mrb[0].mxu0
    %1037 = vdwg.mxu0
    %1038 = vmatprep.subr.mxu0 0.0
    %v1039 = vand.u32 %v655, 4294901760
    %v1040 = vsub.f32 %v655, %v1039
    %v1041 = vand.u32 %v1040, 4294901760
    %1042 = vmatpush1.msra.mxu0 %v1041
    %1043 = vmatprep.subr.mxu0 0.0
    %v1044 = vand.u32 %v656, 4294901760
    %v1045 = vsub.f32 %v656, %v1044
    %v1046 = vand.u32 %v1045, 4294901760
    %1047 = vmatpush1.msra.mxu0 %v1046
    %1048 = vmatprep.subr.mxu0 0.0
    %v1049 = vand.u32 %v657, 4294901760
    %v1050 = vsub.f32 %v657, %v1049
    %v1051 = vand.u32 %v1050, 4294901760
    %1052 = vmatpush1.msra.mxu0 %v1051
    %1053 = vmatprep.subr.mxu0 0.0
    %v1054 = vand.u32 %v658, 4294901760
    %v1055 = vsub.f32 %v658, %v1054
    %v1056 = vand.u32 %v1055, 4294901760
    %1057 = vmatpush1.msra.mxu0 %v1056
    %1058 = vmatprep.subr.mxu0 0.0
    %1059 = vmatpush1.msra.mxu0 0.0
    %1060 = vmatprep.subr.mxu0 0.0
    %1061 = vmatpush1.msra.mxu0 0.0
    %1062 = vmatprep.subr.mxu0 0.0
    %1063 = vmatpush1.msra.mxu0 0.0
    %1064 = vmatprep.subr.mxu0 0.0
    %1065 = vmatpush1.msra.mxu0 0.0
    %1066 = vmatprep.subr.mxu0 0.0
    %1067 = vmatpush1.msra.mxu0 0.0
    %1068 = vmatprep.subr.mxu0 0.0
    %1069 = vmatpush1.msra.mxu0 0.0
    %1070 = vmatprep.subr.mxu0 0.0
    %1071 = vmatpush1.msra.mxu0 0.0
    %1072 = vmatprep.subr.mxu0 0.0
    %1073 = vmatpush1.msra.mxu0 0.0
    %1074 = vmatprep.subr.mxu0 0.0
    %1075 = vmatpush1.msra.mxu0 0.0
    %1076 = vmatprep.subr.mxu0 0.0
    %1077 = vmatpush1.msra.mxu0 0.0
    %1078 = vmatprep.subr.mxu0 0.0
    %1079 = vmatpush1.msra.mxu0 0.0
    %1080 = vmatprep.subr.mxu0 0.0
    %1081 = vmatpush1.msra.mxu0 0.0
    %1082 = vmatprep.subr.mxu0 0.0
    %1083 = vmatpush1.msra.mxu0 0.0
    %1084 = vmatprep.subr.mxu0 0.0
    %1085 = vmatpush1.msra.mxu0 0.0
    %1086 = vmatprep.subr.mxu0 0.0
    %1087 = vmatpush1.msra.mxu0 0.0
    %1088 = vmatprep.subr.mxu0 0.0
    %1089 = vmatpush1.msra.mxu0 0.0
    %1090 = vmatprep.subr.mxu0 0.0
    %1091 = vmatpush1.msra.mxu0 0.0
    %1092 = vmatprep.subr.mxu0 0.0
    %1093 = vmatpush1.msra.mxu0 0.0
    %1094 = vmatprep.subr.mxu0 0.0
    %1095 = vmatpush1.msra.mxu0 0.0
    %1096 = vmatprep.subr.mxu0 0.0
    %1097 = vmatpush1.msra.mxu0 0.0
    %1098 = vmatprep.subr.mxu0 0.0
    %1099 = vmatpush1.msra.mxu0 0.0
    %1100 = vmatprep.subr.mxu0 0.0
    %1101 = vmatpush1.msra.mxu0 0.0
    %1102 = vmatprep.subr.mxu0 0.0
    %1103 = vmatpush1.msra.mxu0 0.0
    %1104 = vmatprep.subr.mxu0 0.0
    %1105 = vmatpush1.msra.mxu0 0.0
    %1106 = vmatprep.subr.mxu0 0.0
    %1107 = vmatpush1.msra.mxu0 0.0
    %1108 = vmatprep.subr.mxu0 0.0
    %1109 = vmatpush1.msra.mxu0 0.0
    %1110 = vmatprep.subr.mxu0 0.0
    %1111 = vmatpush1.msra.mxu0 0.0
    %1112 = vmatprep.subr.mxu0 0.0
    %1113 = vmatpush1.msra.mxu0 0.0
    %1114 = vmatprep.mubr.f32.mxu0 0.0
    %v1115 = vand.u32 %v675, 4294901760
    %1116 = vmatmul.mubr.f32.gmra.mrb[0].mxu0 %v1115
    %v1117 = vpop.f32.mrb[0].mxu0
    %v1118 = vadd.f32 %v1027, %v1117
    %v1119 = vpop.f32.mrb[0].mxu0
    %1120 = vmatprep.mubr.f32.mxu0 0.0
    %v1121 = vand.u32 %v678, 4294901760
    %1122 = vmatmul.mubr.f32.gmra.mrb[0].mxu0 %v1121
    %v1123 = vpop.f32.mrb[0].mxu0
    %v1124 = vadd.f32 %v1035, %v1123
    %v1125 = vpop.f32.mrb[0].mxu0
    %1126 = vdwg.mxu0
    %1127 = vmatprep.subr.mxu0 0.0
    %v1128 = vand.u32 %v655, 4294901760
    %1129 = vmatpush1.msra.mxu0 %v1128
    %1130 = vmatprep.subr.mxu0 0.0
    %v1131 = vand.u32 %v656, 4294901760
    %1132 = vmatpush1.msra.mxu0 %v1131
    %1133 = vmatprep.subr.mxu0 0.0
    %v1134 = vand.u32 %v657, 4294901760
    %1135 = vmatpush1.msra.mxu0 %v1134
    %1136 = vmatprep.subr.mxu0 0.0
    %v1137 = vand.u32 %v658, 4294901760
    %1138 = vmatpush1.msra.mxu0 %v1137
    %1139 = vmatprep.subr.mxu0 0.0
    %1140 = vmatpush1.msra.mxu0 0.0
    %1141 = vmatprep.subr.mxu0 0.0
    %1142 = vmatpush1.msra.mxu0 0.0
    %1143 = vmatprep.subr.mxu0 0.0
    %1144 = vmatpush1.msra.mxu0 0.0
    %1145 = vmatprep.subr.mxu0 0.0
    %1146 = vmatpush1.msra.mxu0 0.0
    %1147 = vmatprep.subr.mxu0 0.0
    %1148 = vmatpush1.msra.mxu0 0.0
    %1149 = vmatprep.subr.mxu0 0.0
    %1150 = vmatpush1.msra.mxu0 0.0
    %1151 = vmatprep.subr.mxu0 0.0
    %1152 = vmatpush1.msra.mxu0 0.0
    %1153 = vmatprep.subr.mxu0 0.0
    %1154 = vmatpush1.msra.mxu0 0.0
    %1155 = vmatprep.subr.mxu0 0.0
    %1156 = vmatpush1.msra.mxu0 0.0
    %1157 = vmatprep.subr.mxu0 0.0
    %1158 = vmatpush1.msra.mxu0 0.0
    %1159 = vmatprep.subr.mxu0 0.0
    %1160 = vmatpush1.msra.mxu0 0.0
    %1161 = vmatprep.subr.mxu0 0.0
    %1162 = vmatpush1.msra.mxu0 0.0
    %1163 = vmatprep.subr.mxu0 0.0
    %1164 = vmatpush1.msra.mxu0 0.0
    %1165 = vmatprep.subr.mxu0 0.0
    %1166 = vmatpush1.msra.mxu0 0.0
    %1167 = vmatprep.subr.mxu0 0.0
    %1168 = vmatpush1.msra.mxu0 0.0
    %1169 = vmatprep.subr.mxu0 0.0
    %1170 = vmatpush1.msra.mxu0 0.0
    %1171 = vmatprep.subr.mxu0 0.0
    %1172 = vmatpush1.msra.mxu0 0.0
    %1173 = vmatprep.subr.mxu0 0.0
    %1174 = vmatpush1.msra.mxu0 0.0
    %1175 = vmatprep.subr.mxu0 0.0
    %1176 = vmatpush1.msra.mxu0 0.0
    %1177 = vmatprep.subr.mxu0 0.0
    %1178 = vmatpush1.msra.mxu0 0.0
    %1179 = vmatprep.subr.mxu0 0.0
    %1180 = vmatpush1.msra.mxu0 0.0
    %1181 = vmatprep.subr.mxu0 0.0
    %1182 = vmatpush1.msra.mxu0 0.0
    %1183 = vmatprep.subr.mxu0 0.0
    %1184 = vmatpush1.msra.mxu0 0.0
    %1185 = vmatprep.subr.mxu0 0.0
    %1186 = vmatpush1.msra.mxu0 0.0
    %1187 = vmatprep.subr.mxu0 0.0
    %1188 = vmatpush1.msra.mxu0 0.0
    %1189 = vmatprep.subr.mxu0 0.0
    %1190 = vmatpush1.msra.mxu0 0.0
    %1191 = vmatprep.subr.mxu0 0.0
    %1192 = vmatpush1.msra.mxu0 0.0
    %1193 = vmatprep.subr.mxu0 0.0
    %1194 = vmatpush1.msra.mxu0 0.0
    %1195 = vmatprep.mubr.f32.mxu0 0.0
    %v1196 = vand.u32 %v675, 4294901760
    %1197 = vmatmul.mubr.f32.gmra.mrb[0].mxu0 %v1196
    %v1198 = vpop.f32.mrb[0].mxu0
    %v1199 = vadd.f32 %v1118, %v1198
    %v1200 = vpop.f32.mrb[0].mxu0
    %1201 = vmatprep.mubr.f32.mxu0 0.0
    %v1202 = vand.u32 %v678, 4294901760
    %1203 = vmatmul.mubr.f32.gmra.mrb[0].mxu0 %v1202
    %v1204 = vpop.f32.mrb[0].mxu0
    %v1205 = vadd.f32 %v1124, %v1204
    %v1206 = vpop.f32.mrb[0].mxu0
    %1207 = vdwg.mxu0
    %v1208 = vmax.f32 %v1199, 0.0
    %v1209 = vmax.f32 %v1205, 0.0
    %v1210 = vld [vmem:[%s5] sm:$0xff]
    %v1211 = vld [vmem:[%s6] sm:$0xff]
    %1213 = vset.pattern.permute.xlu0 0
    %1214 = vperm.xlu0 %1213, %v1211
    %v1215 = vpop.permute.xlu0 %1214
    %v1218 = vsel %vm64, %v1210, 0
    %1220 = vmatprep.subr.mxu0 0.0
    %v1221 = vand.u32 %v1208, 4294901760
    %1222 = vmatpush1.msra.mxu0 %v1221
    %1223 = vmatprep.subr.mxu0 0.0
    %v1224 = vand.u32 %v1209, 4294901760
    %1225 = vmatpush1.msra.mxu0 %v1224
    %1226 = vmatprep.subr.mxu0 0.0
    %1227 = vmatpush1.msra.mxu0 0.0
    %1228 = vmatprep.subr.mxu0 0.0
    %1229 = vmatpush1.msra.mxu0 0.0
    %1230 = vmatprep.subr.mxu0 0.0
    %1231 = vmatpush1.msra.mxu0 0.0
    %1232 = vmatprep.subr.mxu0 0.0
    %1233 = vmatpush1.msra.mxu0 0.0
    %1234 = vmatprep.subr.mxu0 0.0
    %1235 = vmatpush1.msra.mxu0 0.0
    %1236 = vmatprep.subr.mxu0 0.0
    %1237 = vmatpush1.msra.mxu0 0.0
    %1238 = vmatprep.subr.mxu0 0.0
    %1239 = vmatpush1.msra.mxu0 0.0
    %1240 = vmatprep.subr.mxu0 0.0
    %1241 = vmatpush1.msra.mxu0 0.0
    %1242 = vmatprep.subr.mxu0 0.0
    %1243 = vmatpush1.msra.mxu0 0.0
    %1244 = vmatprep.subr.mxu0 0.0
    %1245 = vmatpush1.msra.mxu0 0.0
    %1246 = vmatprep.subr.mxu0 0.0
    %1247 = vmatpush1.msra.mxu0 0.0
    %1248 = vmatprep.subr.mxu0 0.0
    %1249 = vmatpush1.msra.mxu0 0.0
    %1250 = vmatprep.subr.mxu0 0.0
    %1251 = vmatpush1.msra.mxu0 0.0
    %1252 = vmatprep.subr.mxu0 0.0
    %1253 = vmatpush1.msra.mxu0 0.0
    %1254 = vmatprep.subr.mxu0 0.0
    %1255 = vmatpush1.msra.mxu0 0.0
    %1256 = vmatprep.subr.mxu0 0.0
    %1257 = vmatpush1.msra.mxu0 0.0
    %1258 = vmatprep.subr.mxu0 0.0
    %1259 = vmatpush1.msra.mxu0 0.0
    %1260 = vmatprep.subr.mxu0 0.0
    %1261 = vmatpush1.msra.mxu0 0.0
    %1262 = vmatprep.subr.mxu0 0.0
    %1263 = vmatpush1.msra.mxu0 0.0
    %1264 = vmatprep.subr.mxu0 0.0
    %1265 = vmatpush1.msra.mxu0 0.0
    %1266 = vmatprep.subr.mxu0 0.0
    %1267 = vmatpush1.msra.mxu0 0.0
    %1268 = vmatprep.subr.mxu0 0.0
    %1269 = vmatpush1.msra.mxu0 0.0
    %1270 = vmatprep.subr.mxu0 0.0
    %1271 = vmatpush1.msra.mxu0 0.0
    %1272 = vmatprep.subr.mxu0 0.0
    %1273 = vmatpush1.msra.mxu0 0.0
    %1274 = vmatprep.subr.mxu0 0.0
    %1275 = vmatpush1.msra.mxu0 0.0
    %1276 = vmatprep.subr.mxu0 0.0
    %1277 = vmatpush1.msra.mxu0 0.0
    %1278 = vmatprep.subr.mxu0 0.0
    %1279 = vmatpush1.msra.mxu0 0.0
    %1280 = vmatprep.subr.mxu0 0.0
    %1281 = vmatpush1.msra.mxu0 0.0
    %1282 = vmatprep.subr.mxu0 0.0
    %1283 = vmatpush1.msra.mxu0 0.0
    %1284 = vmatprep.subr.mxu0 0.0
    %1285 = vmatpush1.msra.mxu0 0.0
    %1286 = vmatprep.mubr.f32.mxu0 0.0
    %v1287 = vand.u32 %v1218, 4294901760
    %v1288 = vsub.f32 %v1218, %v1287
    %v1289 = vand.u32 %v1288, 4294901760
    %v1290 = vsub.f32 %v1288, %v1289
    %v1291 = vand.u32 %v1290, 4294901760
    %1292 = vmatmul.mubr.f32.gmra.mrb[0].mxu0 %v1291
    %v1293 = vpop.f32.mrb[0].mxu0
    %v1294 = vadd.f32 %v1215, %v1293
    %v1295 = vpop.f32.mrb[0].mxu0
    %1296 = vdwg.mxu0
    %1297 = vmatprep.subr.mxu0 0.0
    %v1298 = vand.u32 %v1208, 4294901760
    %v1299 = vsub.f32 %v1208, %v1298
    %v1300 = vand.u32 %v1299, 4294901760
    %v1301 = vsub.f32 %v1299, %v1300
    %v1302 = vand.u32 %v1301, 4294901760
    %1303 = vmatpush1.msra.mxu0 %v1302
    %1304 = vmatprep.subr.mxu0 0.0
    %v1305 = vand.u32 %v1209, 4294901760
    %v1306 = vsub.f32 %v1209, %v1305
    %v1307 = vand.u32 %v1306, 4294901760
    %v1308 = vsub.f32 %v1306, %v1307
    %v1309 = vand.u32 %v1308, 4294901760
    %1310 = vmatpush1.msra.mxu0 %v1309
    %1311 = vmatprep.subr.mxu0 0.0
    %1312 = vmatpush1.msra.mxu0 0.0
    %1313 = vmatprep.subr.mxu0 0.0
    %1314 = vmatpush1.msra.mxu0 0.0
    %1315 = vmatprep.subr.mxu0 0.0
    %1316 = vmatpush1.msra.mxu0 0.0
    %1317 = vmatprep.subr.mxu0 0.0
    %1318 = vmatpush1.msra.mxu0 0.0
    %1319 = vmatprep.subr.mxu0 0.0
    %1320 = vmatpush1.msra.mxu0 0.0
    %1321 = vmatprep.subr.mxu0 0.0
    %1322 = vmatpush1.msra.mxu0 0.0
    %1323 = vmatprep.subr.mxu0 0.0
    %1324 = vmatpush1.msra.mxu0 0.0
    %1325 = vmatprep.subr.mxu0 0.0
    %1326 = vmatpush1.msra.mxu0 0.0
    %1327 = vmatprep.subr.mxu0 0.0
    %1328 = vmatpush1.msra.mxu0 0.0
    %1329 = vmatprep.subr.mxu0 0.0
    %1330 = vmatpush1.msra.mxu0 0.0
    %1331 = vmatprep.subr.mxu0 0.0
    %1332 = vmatpush1.msra.mxu0 0.0
    %1333 = vmatprep.subr.mxu0 0.0
    %1334 = vmatpush1.msra.mxu0 0.0
    %1335 = vmatprep.subr.mxu0 0.0
    %1336 = vmatpush1.msra.mxu0 0.0
    %1337 = vmatprep.subr.mxu0 0.0
    %1338 = vmatpush1.msra.mxu0 0.0
    %1339 = vmatprep.subr.mxu0 0.0
    %1340 = vmatpush1.msra.mxu0 0.0
    %1341 = vmatprep.subr.mxu0 0.0
    %1342 = vmatpush1.msra.mxu0 0.0
    %1343 = vmatprep.subr.mxu0 0.0
    %1344 = vmatpush1.msra.mxu0 0.0
    %1345 = vmatprep.subr.mxu0 0.0
    %1346 = vmatpush1.msra.mxu0 0.0
    %1347 = vmatprep.subr.mxu0 0.0
    %1348 = vmatpush1.msra.mxu0 0.0
    %1349 = vmatprep.subr.mxu0 0.0
    %1350 = vmatpush1.msra.mxu0 0.0
    %1351 = vmatprep.subr.mxu0 0.0
    %1352 = vmatpush1.msra.mxu0 0.0
    %1353 = vmatprep.subr.mxu0 0.0
    %1354 = vmatpush1.msra.mxu0 0.0
    %1355 = vmatprep.subr.mxu0 0.0
    %1356 = vmatpush1.msra.mxu0 0.0
    %1357 = vmatprep.subr.mxu0 0.0
    %1358 = vmatpush1.msra.mxu0 0.0
    %1359 = vmatprep.subr.mxu0 0.0
    %1360 = vmatpush1.msra.mxu0 0.0
    %1361 = vmatprep.subr.mxu0 0.0
    %1362 = vmatpush1.msra.mxu0 0.0
    %1363 = vmatprep.subr.mxu0 0.0
    %1364 = vmatpush1.msra.mxu0 0.0
    %1365 = vmatprep.subr.mxu0 0.0
    %1366 = vmatpush1.msra.mxu0 0.0
    %1367 = vmatprep.subr.mxu0 0.0
    %1368 = vmatpush1.msra.mxu0 0.0
    %1369 = vmatprep.subr.mxu0 0.0
    %1370 = vmatpush1.msra.mxu0 0.0
    %1371 = vmatprep.mubr.f32.mxu0 0.0
    %v1372 = vand.u32 %v1218, 4294901760
    %1373 = vmatmul.mubr.f32.gmra.mrb[0].mxu0 %v1372
    %v1374 = vpop.f32.mrb[0].mxu0
    %v1375 = vadd.f32 %v1294, %v1374
    %v1376 = vpop.f32.mrb[0].mxu0
    %1377 = vdwg.mxu0
    %1378 = vmatprep.subr.mxu0 0.0
    %v1379 = vand.u32 %v1208, 4294901760
    %v1380 = vsub.f32 %v1208, %v1379
    %1381 = vmatpush1.msra.mxu0 %v1380
    %1382 = vmatprep.subr.mxu0 0.0
    %v1383 = vand.u32 %v1209, 4294901760
    %v1384 = vsub.f32 %v1209, %v1383
    %1385 = vmatpush1.msra.mxu0 %v1384
    %1386 = vmatprep.subr.mxu0 0.0
    %1387 = vmatpush1.msra.mxu0 0.0
    %1388 = vmatprep.subr.mxu0 0.0
    %1389 = vmatpush1.msra.mxu0 0.0
    %1390 = vmatprep.subr.mxu0 0.0
    %1391 = vmatpush1.msra.mxu0 0.0
    %1392 = vmatprep.subr.mxu0 0.0
    %1393 = vmatpush1.msra.mxu0 0.0
    %1394 = vmatprep.subr.mxu0 0.0
    %1395 = vmatpush1.msra.mxu0 0.0
    %1396 = vmatprep.subr.mxu0 0.0
    %1397 = vmatpush1.msra.mxu0 0.0
    %1398 = vmatprep.subr.mxu0 0.0
    %1399 = vmatpush1.msra.mxu0 0.0
    %1400 = vmatprep.subr.mxu0 0.0
    %1401 = vmatpush1.msra.mxu0 0.0
    %1402 = vmatprep.subr.mxu0 0.0
    %1403 = vmatpush1.msra.mxu0 0.0
    %1404 = vmatprep.subr.mxu0 0.0
    %1405 = vmatpush1.msra.mxu0 0.0
    %1406 = vmatprep.subr.mxu0 0.0
    %1407 = vmatpush1.msra.mxu0 0.0
    %1408 = vmatprep.subr.mxu0 0.0
    %1409 = vmatpush1.msra.mxu0 0.0
    %1410 = vmatprep.subr.mxu0 0.0
    %1411 = vmatpush1.msra.mxu0 0.0
    %1412 = vmatprep.subr.mxu0 0.0
    %1413 = vmatpush1.msra.mxu0 0.0
    %1414 = vmatprep.subr.mxu0 0.0
    %1415 = vmatpush1.msra.mxu0 0.0
    %1416 = vmatprep.subr.mxu0 0.0
    %1417 = vmatpush1.msra.mxu0 0.0
    %1418 = vmatprep.subr.mxu0 0.0
    %1419 = vmatpush1.msra.mxu0 0.0
    %1420 = vmatprep.subr.mxu0 0.0
    %1421 = vmatpush1.msra.mxu0 0.0
    %1422 = vmatprep.subr.mxu0 0.0
    %1423 = vmatpush1.msra.mxu0 0.0
    %1424 = vmatprep.subr.mxu0 0.0
    %1425 = vmatpush1.msra.mxu0 0.0
    %1426 = vmatprep.subr.mxu0 0.0
    %1427 = vmatpush1.msra.mxu0 0.0
    %1428 = vmatprep.subr.mxu0 0.0
    %1429 = vmatpush1.msra.mxu0 0.0
    %1430 = vmatprep.subr.mxu0 0.0
    %1431 = vmatpush1.msra.mxu0 0.0
    %1432 = vmatprep.subr.mxu0 0.0
    %1433 = vmatpush1.msra.mxu0 0.0
    %1434 = vmatprep.subr.mxu0 0.0
    %1435 = vmatpush1.msra.mxu0 0.0
    %1436 = vmatprep.subr.mxu0 0.0
    %1437 = vmatpush1.msra.mxu0 0.0
    %1438 = vmatprep.subr.mxu0 0.0
    %1439 = vmatpush1.msra.mxu0 0.0
    %1440 = vmatprep.subr.mxu0 0.0
    %1441 = vmatpush1.msra.mxu0 0.0
    %1442 = vmatprep.subr.mxu0 0.0
    %1443 = vmatpush1.msra.mxu0 0.0
    %1444 = vmatprep.subr.mxu0 0.0
    %1445 = vmatpush1.msra.mxu0 0.0
    %1446 = vmatprep.mubr.f32.mxu0 0.0
    %v1447 = vand.u32 %v1218, 4294901760
    %v1448 = vsub.f32 %v1218, %v1447
    %1449 = vmatmul.mubr.f32.gmra.mrb[0].mxu0 %v1448
    %v1450 = vpop.f32.mrb[0].mxu0
    %v1451 = vadd.f32 %v1375, %v1450
    %v1452 = vpop.f32.mrb[0].mxu0
    %1453 = vdwg.mxu0
    %1454 = vmatprep.subr.mxu0 0.0
    %v1455 = vand.u32 %v1208, 4294901760
    %1456 = vmatpush1.msra.mxu0 %v1455
    %1457 = vmatprep.subr.mxu0 0.0
    %v1458 = vand.u32 %v1209, 4294901760
    %1459 = vmatpush1.msra.mxu0 %v1458
    %1460 = vmatprep.subr.mxu0 0.0
    %1461 = vmatpush1.msra.mxu0 0.0
    %1462 = vmatprep.subr.mxu0 0.0
    %1463 = vmatpush1.msra.mxu0 0.0
    %1464 = vmatprep.subr.mxu0 0.0
    %1465 = vmatpush1.msra.mxu0 0.0
    %1466 = vmatprep.subr.mxu0 0.0
    %1467 = vmatpush1.msra.mxu0 0.0
    %1468 = vmatprep.subr.mxu0 0.0
    %1469 = vmatpush1.msra.mxu0 0.0
    %1470 = vmatprep.subr.mxu0 0.0
    %1471 = vmatpush1.msra.mxu0 0.0
    %1472 = vmatprep.subr.mxu0 0.0
    %1473 = vmatpush1.msra.mxu0 0.0
    %1474 = vmatprep.subr.mxu0 0.0
    %1475 = vmatpush1.msra.mxu0 0.0
    %1476 = vmatprep.subr.mxu0 0.0
    %1477 = vmatpush1.msra.mxu0 0.0
    %1478 = vmatprep.subr.mxu0 0.0
    %1479 = vmatpush1.msra.mxu0 0.0
    %1480 = vmatprep.subr.mxu0 0.0
    %1481 = vmatpush1.msra.mxu0 0.0
    %1482 = vmatprep.subr.mxu0 0.0
    %1483 = vmatpush1.msra.mxu0 0.0
    %1484 = vmatprep.subr.mxu0 0.0
    %1485 = vmatpush1.msra.mxu0 0.0
    %1486 = vmatprep.subr.mxu0 0.0
    %1487 = vmatpush1.msra.mxu0 0.0
    %1488 = vmatprep.subr.mxu0 0.0
    %1489 = vmatpush1.msra.mxu0 0.0
    %1490 = vmatprep.subr.mxu0 0.0
    %1491 = vmatpush1.msra.mxu0 0.0
    %1492 = vmatprep.subr.mxu0 0.0
    %1493 = vmatpush1.msra.mxu0 0.0
    %1494 = vmatprep.subr.mxu0 0.0
    %1495 = vmatpush1.msra.mxu0 0.0
    %1496 = vmatprep.subr.mxu0 0.0
    %1497 = vmatpush1.msra.mxu0 0.0
    %1498 = vmatprep.subr.mxu0 0.0
    %1499 = vmatpush1.msra.mxu0 0.0
    %1500 = vmatprep.subr.mxu0 0.0
    %1501 = vmatpush1.msra.mxu0 0.0
    %1502 = vmatprep.subr.mxu0 0.0
    %1503 = vmatpush1.msra.mxu0 0.0
    %1504 = vmatprep.subr.mxu0 0.0
    %1505 = vmatpush1.msra.mxu0 0.0
    %1506 = vmatprep.subr.mxu0 0.0
    %1507 = vmatpush1.msra.mxu0 0.0
    %1508 = vmatprep.subr.mxu0 0.0
    %1509 = vmatpush1.msra.mxu0 0.0
    %1510 = vmatprep.subr.mxu0 0.0
    %1511 = vmatpush1.msra.mxu0 0.0
    %1512 = vmatprep.subr.mxu0 0.0
    %1513 = vmatpush1.msra.mxu0 0.0
    %1514 = vmatprep.subr.mxu0 0.0
    %1515 = vmatpush1.msra.mxu0 0.0
    %1516 = vmatprep.subr.mxu0 0.0
    %1517 = vmatpush1.msra.mxu0 0.0
    %1518 = vmatprep.subr.mxu0 0.0
    %1519 = vmatpush1.msra.mxu0 0.0
    %1520 = vmatprep.mubr.f32.mxu0 0.0
    %v1521 = vand.u32 %v1218, 4294901760
    %v1522 = vsub.f32 %v1218, %v1521
    %v1523 = vand.u32 %v1522, 4294901760
    %1524 = vmatmul.mubr.f32.gmra.mrb[0].mxu0 %v1523
    %v1525 = vpop.f32.mrb[0].mxu0
    %v1526 = vadd.f32 %v1451, %v1525
    %v1527 = vpop.f32.mrb[0].mxu0
    %1528 = vdwg.mxu0
    %1529 = vmatprep.subr.mxu0 0.0
    %v1530 = vand.u32 %v1208, 4294901760
    %v1531 = vsub.f32 %v1208, %v1530
    %v1532 = vand.u32 %v1531, 4294901760
    %1533 = vmatpush1.msra.mxu0 %v1532
    %1534 = vmatprep.subr.mxu0 0.0
    %v1535 = vand.u32 %v1209, 4294901760
    %v1536 = vsub.f32 %v1209, %v1535
    %v1537 = vand.u32 %v1536, 4294901760
    %1538 = vmatpush1.msra.mxu0 %v1537
    %1539 = vmatprep.subr.mxu0 0.0
    %1540 = vmatpush1.msra.mxu0 0.0
    %1541 = vmatprep.subr.mxu0 0.0
    %1542 = vmatpush1.msra.mxu0 0.0
    %1543 = vmatprep.subr.mxu0 0.0
    %1544 = vmatpush1.msra.mxu0 0.0
    %1545 = vmatprep.subr.mxu0 0.0
    %1546 = vmatpush1.msra.mxu0 0.0
    %1547 = vmatprep.subr.mxu0 0.0
    %1548 = vmatpush1.msra.mxu0 0.0
    %1549 = vmatprep.subr.mxu0 0.0
    %1550 = vmatpush1.msra.mxu0 0.0
    %1551 = vmatprep.subr.mxu0 0.0
    %1552 = vmatpush1.msra.mxu0 0.0
    %1553 = vmatprep.subr.mxu0 0.0
    %1554 = vmatpush1.msra.mxu0 0.0
    %1555 = vmatprep.subr.mxu0 0.0
    %1556 = vmatpush1.msra.mxu0 0.0
    %1557 = vmatprep.subr.mxu0 0.0
    %1558 = vmatpush1.msra.mxu0 0.0
    %1559 = vmatprep.subr.mxu0 0.0
    %1560 = vmatpush1.msra.mxu0 0.0
    %1561 = vmatprep.subr.mxu0 0.0
    %1562 = vmatpush1.msra.mxu0 0.0
    %1563 = vmatprep.subr.mxu0 0.0
    %1564 = vmatpush1.msra.mxu0 0.0
    %1565 = vmatprep.subr.mxu0 0.0
    %1566 = vmatpush1.msra.mxu0 0.0
    %1567 = vmatprep.subr.mxu0 0.0
    %1568 = vmatpush1.msra.mxu0 0.0
    %1569 = vmatprep.subr.mxu0 0.0
    %1570 = vmatpush1.msra.mxu0 0.0
    %1571 = vmatprep.subr.mxu0 0.0
    %1572 = vmatpush1.msra.mxu0 0.0
    %1573 = vmatprep.subr.mxu0 0.0
    %1574 = vmatpush1.msra.mxu0 0.0
    %1575 = vmatprep.subr.mxu0 0.0
    %1576 = vmatpush1.msra.mxu0 0.0
    %1577 = vmatprep.subr.mxu0 0.0
    %1578 = vmatpush1.msra.mxu0 0.0
    %1579 = vmatprep.subr.mxu0 0.0
    %1580 = vmatpush1.msra.mxu0 0.0
    %1581 = vmatprep.subr.mxu0 0.0
    %1582 = vmatpush1.msra.mxu0 0.0
    %1583 = vmatprep.subr.mxu0 0.0
    %1584 = vmatpush1.msra.mxu0 0.0
    %1585 = vmatprep.subr.mxu0 0.0
    %1586 = vmatpush1.msra.mxu0 0.0
    %1587 = vmatprep.subr.mxu0 0.0
    %1588 = vmatpush1.msra.mxu0 0.0
    %1589 = vmatprep.subr.mxu0 0.0
    %1590 = vmatpush1.msra.mxu0 0.0
    %1591 = vmatprep.subr.mxu0 0.0
    %1592 = vmatpush1.msra.mxu0 0.0
    %1593 = vmatprep.subr.mxu0 0.0
    %1594 = vmatpush1.msra.mxu0 0.0
    %1595 = vmatprep.subr.mxu0 0.0
    %1596 = vmatpush1.msra.mxu0 0.0
    %1597 = vmatprep.subr.mxu0 0.0
    %1598 = vmatpush1.msra.mxu0 0.0
    %1599 = vmatprep.mubr.f32.mxu0 0.0
    %v1600 = vand.u32 %v1218, 4294901760
    %1601 = vmatmul.mubr.f32.gmra.mrb[0].mxu0 %v1600
    %v1602 = vpop.f32.mrb[0].mxu0
    %v1603 = vadd.f32 %v1526, %v1602
    %v1604 = vpop.f32.mrb[0].mxu0
    %1605 = vdwg.mxu0
    %1606 = vmatprep.subr.mxu0 0.0
    %v1607 = vand.u32 %v1208, 4294901760
    %1608 = vmatpush1.msra.mxu0 %v1607
    %1609 = vmatprep.subr.mxu0 0.0
    %v1610 = vand.u32 %v1209, 4294901760
    %1611 = vmatpush1.msra.mxu0 %v1610
    %1612 = vmatprep.subr.mxu0 0.0
    %1613 = vmatpush1.msra.mxu0 0.0
    %1614 = vmatprep.subr.mxu0 0.0
    %1615 = vmatpush1.msra.mxu0 0.0
    %1616 = vmatprep.subr.mxu0 0.0
    %1617 = vmatpush1.msra.mxu0 0.0
    %1618 = vmatprep.subr.mxu0 0.0
    %1619 = vmatpush1.msra.mxu0 0.0
    %1620 = vmatprep.subr.mxu0 0.0
    %1621 = vmatpush1.msra.mxu0 0.0
    %1622 = vmatprep.subr.mxu0 0.0
    %1623 = vmatpush1.msra.mxu0 0.0
    %1624 = vmatprep.subr.mxu0 0.0
    %1625 = vmatpush1.msra.mxu0 0.0
    %1626 = vmatprep.subr.mxu0 0.0
    %1627 = vmatpush1.msra.mxu0 0.0
    %1628 = vmatprep.subr.mxu0 0.0
    %1629 = vmatpush1.msra.mxu0 0.0
    %1630 = vmatprep.subr.mxu0 0.0
    %1631 = vmatpush1.msra.mxu0 0.0
    %1632 = vmatprep.subr.mxu0 0.0
    %1633 = vmatpush1.msra.mxu0 0.0
    %1634 = vmatprep.subr.mxu0 0.0
    %1635 = vmatpush1.msra.mxu0 0.0
    %1636 = vmatprep.subr.mxu0 0.0
    %1637 = vmatpush1.msra.mxu0 0.0
    %1638 = vmatprep.subr.mxu0 0.0
    %1639 = vmatpush1.msra.mxu0 0.0
    %1640 = vmatprep.subr.mxu0 0.0
    %1641 = vmatpush1.msra.mxu0 0.0
    %1642 = vmatprep.subr.mxu0 0.0
    %1643 = vmatpush1.msra.mxu0 0.0
    %1644 = vmatprep.subr.mxu0 0.0
    %1645 = vmatpush1.msra.mxu0 0.0
    %1646 = vmatprep.subr.mxu0 0.0
    %1647 = vmatpush1.msra.mxu0 0.0
    %1648 = vmatprep.subr.mxu0 0.0
    %1649 = vmatpush1.msra.mxu0 0.0
    %1650 = vmatprep.subr.mxu0 0.0
    %1651 = vmatpush1.msra.mxu0 0.0
    %1652 = vmatprep.subr.mxu0 0.0
    %1653 = vmatpush1.msra.mxu0 0.0
    %1654 = vmatprep.subr.mxu0 0.0
    %1655 = vmatpush1.msra.mxu0 0.0
    %1656 = vmatprep.subr.mxu0 0.0
    %1657 = vmatpush1.msra.mxu0 0.0
    %1658 = vmatprep.subr.mxu0 0.0
    %1659 = vmatpush1.msra.mxu0 0.0
    %1660 = vmatprep.subr.mxu0 0.0
    %1661 = vmatpush1.msra.mxu0 0.0
    %1662 = vmatprep.subr.mxu0 0.0
    %1663 = vmatpush1.msra.mxu0 0.0
    %1664 = vmatprep.subr.mxu0 0.0
    %1665 = vmatpush1.msra.mxu0 0.0
    %1666 = vmatprep.subr.mxu0 0.0
    %1667 = vmatpush1.msra.mxu0 0.0
    %1668 = vmatprep.subr.mxu0 0.0
    %1669 = vmatpush1.msra.mxu0 0.0
    %1670 = vmatprep.subr.mxu0 0.0
    %1671 = vmatpush1.msra.mxu0 0.0
    %1672 = vmatprep.mubr.f32.mxu0 0.0
    %v1673 = vand.u32 %v1218, 4294901760
    %1674 = vmatmul.mubr.f32.gmra.mrb[0].mxu0 %v1673
    %v1675 = vpop.f32.mrb[0].mxu0
    %v1676 = vadd.f32 %v1603, %v1675
    %v1677 = vpop.f32.mrb[0].mxu0
    %1678 = vdwg.mxu0
    %v1679 = vmax.f32 %v1676, 0.0
    %v1680 = vld [vmem:[%s7] sm:$0x1]
    %v1681 = vld [vmem:[#allocation2] sm:$0x1]
    %1683 = vset.pattern.permute.xlu0 0
    %1684 = vperm.xlu0 %1683, %v1681
    %v1685 = vpop.permute.xlu0 %1684
    %v1687 = vlaneseq
    %v1688 = vshrl.u32 %v1687, 7
    %v1689 = vsub.s32 0, %v1688
    %v1690 = vrot.slane %v1685, %v1689
    %vm1691 = vcmask 64512
    %v1693 = vsel %vm1691, %v1680, 0
    %1695 = vmatprep.subr.mxu0 0.0
    %v1696 = vand.u32 %v1679, 4294901760
    %1697 = vmatpush1.msra.mxu0 %v1696
    %1698 = vmatprep.subr.mxu0 0.0
    %1699 = vmatpush1.msra.mxu0 0.0
    %1700 = vmatprep.subr.mxu0 0.0
    %1701 = vmatpush1.msra.mxu0 0.0
    %1702 = vmatprep.subr.mxu0 0.0
    %1703 = vmatpush1.msra.mxu0 0.0
    %1704 = vmatprep.subr.mxu0 0.0
    %1705 = vmatpush1.msra.mxu0 0.0
    %1706 = vmatprep.subr.mxu0 0.0
    %1707 = vmatpush1.msra.mxu0 0.0
    %1708 = vmatprep.subr.mxu0 0.0
    %1709 = vmatpush1.msra.mxu0 0.0
    %1710 = vmatprep.subr.mxu0 0.0
    %1711 = vmatpush1.msra.mxu0 0.0
    %1712 = vmatprep.subr.mxu0 0.0
    %1713 = vmatpush1.msra.mxu0 0.0
    %1714 = vmatprep.subr.mxu0 0.0
    %1715 = vmatpush1.msra.mxu0 0.0
    %1716 = vmatprep.subr.mxu0 0.0
    %1717 = vmatpush1.msra.mxu0 0.0
    %1718 = vmatprep.subr.mxu0 0.0
    %1719 = vmatpush1.msra.mxu0 0.0
    %1720 = vmatprep.subr.mxu0 0.0
    %1721 = vmatpush1.msra.mxu0 0.0
    %1722 = vmatprep.subr.mxu0 0.0
    %1723 = vmatpush1.msra.mxu0 0.0
    %1724 = vmatprep.subr.mxu0 0.0
    %1725 = vmatpush1.msra.mxu0 0.0
    %1726 = vmatprep.subr.mxu0 0.0
    %1727 = vmatpush1.msra.mxu0 0.0
    %1728 = vmatprep.subr.mxu0 0.0
    %1729 = vmatpush1.msra.mxu0 0.0
    %1730 = vmatprep.subr.mxu0 0.0
    %1731 = vmatpush1.msra.mxu0 0.0
    %1732 = vmatprep.subr.mxu0 0.0
    %1733 = vmatpush1.msra.mxu0 0.0
    %1734 = vmatprep.subr.mxu0 0.0
    %1735 = vmatpush1.msra.mxu0 0.0
    %1736 = vmatprep.subr.mxu0 0.0
    %1737 = vmatpush1.msra.mxu0 0.0
    %1738 = vmatprep.subr.mxu0 0.0
    %1739 = vmatpush1.msra.mxu0 0.0
    %1740 = vmatprep.subr.mxu0 0.0
    %1741 = vmatpush1.msra.mxu0 0.0
    %1742 = vmatprep.subr.mxu0 0.0
    %1743 = vmatpush1.msra.mxu0 0.0
    %1744 = vmatprep.subr.mxu0 0.0
    %1745 = vmatpush1.msra.mxu0 0.0
    %1746 = vmatprep.subr.mxu0 0.0
    %1747 = vmatpush1.msra.mxu0 0.0
    %1748 = vmatprep.subr.mxu0 0.0
    %1749 = vmatpush1.msra.mxu0 0.0
    %1750 = vmatprep.subr.mxu0 0.0
    %1751 = vmatpush1.msra.mxu0 0.0
    %1752 = vmatprep.subr.mxu0 0.0
    %1753 = vmatpush1.msra.mxu0 0.0
    %1754 = vmatprep.subr.mxu0 0.0
    %1755 = vmatpush1.msra.mxu0 0.0
    %1756 = vmatprep.subr.mxu0 0.0
    %1757 = vmatpush1.msra.mxu0 0.0
    %1758 = vmatprep.subr.mxu0 0.0
    %1759 = vmatpush1.msra.mxu0 0.0
    %1760 = vmatprep.mubr.f32.mxu0 0.0
    %v1761 = vand.u32 %v1693, 4294901760
    %v1762 = vsub.f32 %v1693, %v1761
    %v1763 = vand.u32 %v1762, 4294901760
    %v1764 = vsub.f32 %v1762, %v1763
    %v1765 = vand.u32 %v1764, 4294901760
    %1766 = vmatmul.mubr.f32.gmra.mrb[0].mxu0 %v1765
    %v1767 = vpop.f32.mrb[0].mxu0
    %v1768 = vadd.f32 %v1690, %v1767
    %v1769 = vpop.f32.mrb[0].mxu0
    %1770 = vdwg.mxu0
    %1771 = vmatprep.subr.mxu0 0.0
    %v1772 = vand.u32 %v1679, 4294901760
    %v1773 = vsub.f32 %v1679, %v1772
    %v1774 = vand.u32 %v1773, 4294901760
    %v1775 = vsub.f32 %v1773, %v1774
    %v1776 = vand.u32 %v1775, 4294901760
    %1777 = vmatpush1.msra.mxu0 %v1776
    %1778 = vmatprep.subr.mxu0 0.0
    %1779 = vmatpush1.msra.mxu0 0.0
    %1780 = vmatprep.subr.mxu0 0.0
    %1781 = vmatpush1.msra.mxu0 0.0
    %1782 = vmatprep.subr.mxu0 0.0
    %1783 = vmatpush1.msra.mxu0 0.0
    %1784 = vmatprep.subr.mxu0 0.0
    %1785 = vmatpush1.msra.mxu0 0.0
    %1786 = vmatprep.subr.mxu0 0.0
    %1787 = vmatpush1.msra.mxu0 0.0
    %1788 = vmatprep.subr.mxu0 0.0
    %1789 = vmatpush1.msra.mxu0 0.0
    %1790 = vmatprep.subr.mxu0 0.0
    %1791 = vmatpush1.msra.mxu0 0.0
    %1792 = vmatprep.subr.mxu0 0.0
    %1793 = vmatpush1.msra.mxu0 0.0
    %1794 = vmatprep.subr.mxu0 0.0
    %1795 = vmatpush1.msra.mxu0 0.0
    %1796 = vmatprep.subr.mxu0 0.0
    %1797 = vmatpush1.msra.mxu0 0.0
    %1798 = vmatprep.subr.mxu0 0.0
    %1799 = vmatpush1.msra.mxu0 0.0
    %1800 = vmatprep.subr.mxu0 0.0
    %1801 = vmatpush1.msra.mxu0 0.0
    %1802 = vmatprep.subr.mxu0 0.0
    %1803 = vmatpush1.msra.mxu0 0.0
    %1804 = vmatprep.subr.mxu0 0.0
    %1805 = vmatpush1.msra.mxu0 0.0
    %1806 = vmatprep.subr.mxu0 0.0
    %1807 = vmatpush1.msra.mxu0 0.0
    %1808 = vmatprep.subr.mxu0 0.0
    %1809 = vmatpush1.msra.mxu0 0.0
    %1810 = vmatprep.subr.mxu0 0.0
    %1811 = vmatpush1.msra.mxu0 0.0
    %1812 = vmatprep.subr.mxu0 0.0
    %1813 = vmatpush1.msra.mxu0 0.0
    %1814 = vmatprep.subr.mxu0 0.0
    %1815 = vmatpush1.msra.mxu0 0.0
    %1816 = vmatprep.subr.mxu0 0.0
    %1817 = vmatpush1.msra.mxu0 0.0
    %1818 = vmatprep.subr.mxu0 0.0
    %1819 = vmatpush1.msra.mxu0 0.0
    %1820 = vmatprep.subr.mxu0 0.0
    %1821 = vmatpush1.msra.mxu0 0.0
    %1822 = vmatprep.subr.mxu0 0.0
    %1823 = vmatpush1.msra.mxu0 0.0
    %1824 = vmatprep.subr.mxu0 0.0
    %1825 = vmatpush1.msra.mxu0 0.0
    %1826 = vmatprep.subr.mxu0 0.0
    %1827 = vmatpush1.msra.mxu0 0.0
    %1828 = vmatprep.subr.mxu0 0.0
    %1829 = vmatpush1.msra.mxu0 0.0
    %1830 = vmatprep.subr.mxu0 0.0
    %1831 = vmatpush1.msra.mxu0 0.0
    %1832 = vmatprep.subr.mxu0 0.0
    %1833 = vmatpush1.msra.mxu0 0.0
    %1834 = vmatprep.subr.mxu0 0.0
    %1835 = vmatpush1.msra.mxu0 0.0
    %1836 = vmatprep.subr.mxu0 0.0
    %1837 = vmatpush1.msra.mxu0 0.0
    %1838 = vmatprep.subr.mxu0 0.0
    %1839 = vmatpush1.msra.mxu0 0.0
    %1840 = vmatprep.mubr.f32.mxu0 0.0
    %v1841 = vand.u32 %v1693, 4294901760
    %1842 = vmatmul.mubr.f32.gmra.mrb[0].mxu0 %v1841
    %v1843 = vpop.f32.mrb[0].mxu0
    %v1844 = vadd.f32 %v1768, %v1843
    %v1845 = vpop.f32.mrb[0].mxu0
    %1846 = vdwg.mxu0
    %1847 = vmatprep.subr.mxu0 0.0
    %v1848 = vand.u32 %v1679, 4294901760
    %v1849 = vsub.f32 %v1679, %v1848
    %1850 = vmatpush1.msra.mxu0 %v1849
    %1851 = vmatprep.subr.mxu0 0.0
    %1852 = vmatpush1.msra.mxu0 0.0
    %1853 = vmatprep.subr.mxu0 0.0
    %1854 = vmatpush1.msra.mxu0 0.0
    %1855 = vmatprep.subr.mxu0 0.0
    %1856 = vmatpush1.msra.mxu0 0.0
    %1857 = vmatprep.subr.mxu0 0.0
    %1858 = vmatpush1.msra.mxu0 0.0
    %1859 = vmatprep.subr.mxu0 0.0
    %1860 = vmatpush1.msra.mxu0 0.0
    %1861 = vmatprep.subr.mxu0 0.0
    %1862 = vmatpush1.msra.mxu0 0.0
    %1863 = vmatprep.subr.mxu0 0.0
    %1864 = vmatpush1.msra.mxu0 0.0
    %1865 = vmatprep.subr.mxu0 0.0
    %1866 = vmatpush1.msra.mxu0 0.0
    %1867 = vmatprep.subr.mxu0 0.0
    %1868 = vmatpush1.msra.mxu0 0.0
    %1869 = vmatprep.subr.mxu0 0.0
    %1870 = vmatpush1.msra.mxu0 0.0
    %1871 = vmatprep.subr.mxu0 0.0
    %1872 = vmatpush1.msra.mxu0 0.0
    %1873 = vmatprep.subr.mxu0 0.0
    %1874 = vmatpush1.msra.mxu0 0.0
    %1875 = vmatprep.subr.mxu0 0.0
    %1876 = vmatpush1.msra.mxu0 0.0
    %1877 = vmatprep.subr.mxu0 0.0
    %1878 = vmatpush1.msra.mxu0 0.0
    %1879 = vmatprep.subr.mxu0 0.0
    %1880 = vmatpush1.msra.mxu0 0.0
    %1881 = vmatprep.subr.mxu0 0.0
    %1882 = vmatpush1.msra.mxu0 0.0
    %1883 = vmatprep.subr.mxu0 0.0
    %1884 = vmatpush1.msra.mxu0 0.0
    %1885 = vmatprep.subr.mxu0 0.0
    %1886 = vmatpush1.msra.mxu0 0.0
    %1887 = vmatprep.subr.mxu0 0.0
    %1888 = vmatpush1.msra.mxu0 0.0
    %1889 = vmatprep.subr.mxu0 0.0
    %1890 = vmatpush1.msra.mxu0 0.0
    %1891 = vmatprep.subr.mxu0 0.0
    %1892 = vmatpush1.msra.mxu0 0.0
    %1893 = vmatprep.subr.mxu0 0.0
    %1894 = vmatpush1.msra.mxu0 0.0
    %1895 = vmatprep.subr.mxu0 0.0
    %1896 = vmatpush1.msra.mxu0 0.0
    %1897 = vmatprep.subr.mxu0 0.0
    %1898 = vmatpush1.msra.mxu0 0.0
    %1899 = vmatprep.subr.mxu0 0.0
    %1900 = vmatpush1.msra.mxu0 0.0
    %1901 = vmatprep.subr.mxu0 0.0
    %1902 = vmatpush1.msra.mxu0 0.0
    %1903 = vmatprep.subr.mxu0 0.0
    %1904 = vmatpush1.msra.mxu0 0.0
    %1905 = vmatprep.subr.mxu0 0.0
    %1906 = vmatpush1.msra.mxu0 0.0
    %1907 = vmatprep.subr.mxu0 0.0
    %1908 = vmatpush1.msra.mxu0 0.0
    %1909 = vmatprep.subr.mxu0 0.0
    %1910 = vmatpush1.msra.mxu0 0.0
    %1911 = vmatprep.subr.mxu0 0.0
    %1912 = vmatpush1.msra.mxu0 0.0
    %1913 = vmatprep.mubr.f32.mxu0 0.0
    %v1914 = vand.u32 %v1693, 4294901760
    %v1915 = vsub.f32 %v1693, %v1914
    %1916 = vmatmul.mubr.f32.gmra.mrb[0].mxu0 %v1915
    %v1917 = vpop.f32.mrb[0].mxu0
    %v1918 = vadd.f32 %v1844, %v1917
    %v1919 = vpop.f32.mrb[0].mxu0
    %1920 = vdwg.mxu0
    %1921 = vmatprep.subr.mxu0 0.0
    %v1922 = vand.u32 %v1679, 4294901760
    %1923 = vmatpush1.msra.mxu0 %v1922
    %1924 = vmatprep.subr.mxu0 0.0
    %1925 = vmatpush1.msra.mxu0 0.0
    %1926 = vmatprep.subr.mxu0 0.0
    %1927 = vmatpush1.msra.mxu0 0.0
    %1928 = vmatprep.subr.mxu0 0.0
    %1929 = vmatpush1.msra.mxu0 0.0
    %1930 = vmatprep.subr.mxu0 0.0
    %1931 = vmatpush1.msra.mxu0 0.0
    %1932 = vmatprep.subr.mxu0 0.0
    %1933 = vmatpush1.msra.mxu0 0.0
    %1934 = vmatprep.subr.mxu0 0.0
    %1935 = vmatpush1.msra.mxu0 0.0
    %1936 = vmatprep.subr.mxu0 0.0
    %1937 = vmatpush1.msra.mxu0 0.0
    %1938 = vmatprep.subr.mxu0 0.0
    %1939 = vmatpush1.msra.mxu0 0.0
    %1940 = vmatprep.subr.mxu0 0.0
    %1941 = vmatpush1.msra.mxu0 0.0
    %1942 = vmatprep.subr.mxu0 0.0
    %1943 = vmatpush1.msra.mxu0 0.0
    %1944 = vmatprep.subr.mxu0 0.0
    %1945 = vmatpush1.msra.mxu0 0.0
    %1946 = vmatprep.subr.mxu0 0.0
    %1947 = vmatpush1.msra.mxu0 0.0
    %1948 = vmatprep.subr.mxu0 0.0
    %1949 = vmatpush1.msra.mxu0 0.0
    %1950 = vmatprep.subr.mxu0 0.0
    %1951 = vmatpush1.msra.mxu0 0.0
    %1952 = vmatprep.subr.mxu0 0.0
    %1953 = vmatpush1.msra.mxu0 0.0
    %1954 = vmatprep.subr.mxu0 0.0
    %1955 = vmatpush1.msra.mxu0 0.0
    %1956 = vmatprep.subr.mxu0 0.0
    %1957 = vmatpush1.msra.mxu0 0.0
    %1958 = vmatprep.subr.mxu0 0.0
    %1959 = vmatpush1.msra.mxu0 0.0
    %1960 = vmatprep.subr.mxu0 0.0
    %1961 = vmatpush1.msra.mxu0 0.0
    %1962 = vmatprep.subr.mxu0 0.0
    %1963 = vmatpush1.msra.mxu0 0.0
    %1964 = vmatprep.subr.mxu0 0.0
    %1965 = vmatpush1.msra.mxu0 0.0
    %1966 = vmatprep.subr.mxu0 0.0
    %1967 = vmatpush1.msra.mxu0 0.0
    %1968 = vmatprep.subr.mxu0 0.0
    %1969 = vmatpush1.msra.mxu0 0.0
    %1970 = vmatprep.subr.mxu0 0.0
    %1971 = vmatpush1.msra.mxu0 0.0
    %1972 = vmatprep.subr.mxu0 0.0
    %1973 = vmatpush1.msra.mxu0 0.0
    %1974 = vmatprep.subr.mxu0 0.0
    %1975 = vmatpush1.msra.mxu0 0.0
    %1976 = vmatprep.subr.mxu0 0.0
    %1977 = vmatpush1.msra.mxu0 0.0
    %1978 = vmatprep.subr.mxu0 0.0
    %1979 = vmatpush1.msra.mxu0 0.0
    %1980 = vmatprep.subr.mxu0 0.0
    %1981 = vmatpush1.msra.mxu0 0.0
    %1982 = vmatprep.subr.mxu0 0.0
    %1983 = vmatpush1.msra.mxu0 0.0
    %1984 = vmatprep.subr.mxu0 0.0
    %1985 = vmatpush1.msra.mxu0 0.0
    %1986 = vmatprep.mubr.f32.mxu0 0.0
    %v1987 = vand.u32 %v1693, 4294901760
    %v1988 = vsub.f32 %v1693, %v1987
    %v1989 = vand.u32 %v1988, 4294901760
    %1990 = vmatmul.mubr.f32.gmra.mrb[0].mxu0 %v1989
    %v1991 = vpop.f32.mrb[0].mxu0
    %v1992 = vadd.f32 %v1918, %v1991
    %v1993 = vpop.f32.mrb[0].mxu0
    %1994 = vdwg.mxu0
    %1995 = vmatprep.subr.mxu0 0.0
    %v1996 = vand.u32 %v1679, 4294901760
    %v1997 = vsub.f32 %v1679, %v1996
    %v1998 = vand.u32 %v1997, 4294901760
    %1999 = vmatpush1.msra.mxu0 %v1998
    %2000 = vmatprep.subr.mxu0 0.0
    %2001 = vmatpush1.msra.mxu0 0.0
    %2002 = vmatprep.subr.mxu0 0.0
    %2003 = vmatpush1.msra.mxu0 0.0
    %2004 = vmatprep.subr.mxu0 0.0
    %2005 = vmatpush1.msra.mxu0 0.0
    %2006 = vmatprep.subr.mxu0 0.0
    %2007 = vmatpush1.msra.mxu0 0.0
    %2008 = vmatprep.subr.mxu0 0.0
    %2009 = vmatpush1.msra.mxu0 0.0
    %2010 = vmatprep.subr.mxu0 0.0
    %2011 = vmatpush1.msra.mxu0 0.0
    %2012 = vmatprep.subr.mxu0 0.0
    %2013 = vmatpush1.msra.mxu0 0.0
    %2014 = vmatprep.subr.mxu0 0.0
    %2015 = vmatpush1.msra.mxu0 0.0
    %2016 = vmatprep.subr.mxu0 0.0
    %2017 = vmatpush1.msra.mxu0 0.0
    %2018 = vmatprep.subr.mxu0 0.0
    %2019 = vmatpush1.msra.mxu0 0.0
    %2020 = vmatprep.subr.mxu0 0.0
    %2021 = vmatpush1.msra.mxu0 0.0
    %2022 = vmatprep.subr.mxu0 0.0
    %2023 = vmatpush1.msra.mxu0 0.0
    %2024 = vmatprep.subr.mxu0 0.0
    %2025 = vmatpush1.msra.mxu0 0.0
    %2026 = vmatprep.subr.mxu0 0.0
    %2027 = vmatpush1.msra.mxu0 0.0
    %2028 = vmatprep.subr.mxu0 0.0
    %2029 = vmatpush1.msra.mxu0 0.0
    %2030 = vmatprep.subr.mxu0 0.0
    %2031 = vmatpush1.msra.mxu0 0.0
    %2032 = vmatprep.subr.mxu0 0.0
    %2033 = vmatpush1.msra.mxu0 0.0
    %2034 = vmatprep.subr.mxu0 0.0
    %2035 = vmatpush1.msra.mxu0 0.0
    %2036 = vmatprep.subr.mxu0 0.0
    %2037 = vmatpush1.msra.mxu0 0.0
    %2038 = vmatprep.subr.mxu0 0.0
    %2039 = vmatpush1.msra.mxu0 0.0
    %2040 = vmatprep.subr.mxu0 0.0
    %2041 = vmatpush1.msra.mxu0 0.0
    %2042 = vmatprep.subr.mxu0 0.0
    %2043 = vmatpush1.msra.mxu0 0.0
    %2044 = vmatprep.subr.mxu0 0.0
    %2045 = vmatpush1.msra.mxu0 0.0
    %2046 = vmatprep.subr.mxu0 0.0
    %2047 = vmatpush1.msra.mxu0 0.0
    %2048 = vmatprep.subr.mxu0 0.0
    %2049 = vmatpush1.msra.mxu0 0.0
    %2050 = vmatprep.subr.mxu0 0.0
    %2051 = vmatpush1.msra.mxu0 0.0
    %2052 = vmatprep.subr.mxu0 0.0
    %2053 = vmatpush1.msra.mxu0 0.0
    %2054 = vmatprep.subr.mxu0 0.0
    %2055 = vmatpush1.msra.mxu0 0.0
    %2056 = vmatprep.subr.mxu0 0.0
    %2057 = vmatpush1.msra.mxu0 0.0
    %2058 = vmatprep.subr.mxu0 0.0
    %2059 = vmatpush1.msra.mxu0 0.0
    %2060 = vmatprep.subr.mxu0 0.0
    %2061 = vmatpush1.msra.mxu0 0.0
    %2062 = vmatprep.mubr.f32.mxu0 0.0
    %v2063 = vand.u32 %v1693, 4294901760
    %2064 = vmatmul.mubr.f32.gmra.mrb[0].mxu0 %v2063
    %v2065 = vpop.f32.mrb[0].mxu0
    %v2066 = vadd.f32 %v1992, %v2065
    %v2067 = vpop.f32.mrb[0].mxu0
    %2068 = vdwg.mxu0
    %2069 = vmatprep.subr.mxu0 0.0
    %v2070 = vand.u32 %v1679, 4294901760
    %2071 = vmatpush1.msra.mxu0 %v2070
    %2072 = vmatprep.subr.mxu0 0.0
    %2073 = vmatpush1.msra.mxu0 0.0
    %2074 = vmatprep.subr.mxu0 0.0
    %2075 = vmatpush1.msra.mxu0 0.0
    %2076 = vmatprep.subr.mxu0 0.0
    %2077 = vmatpush1.msra.mxu0 0.0
    %2078 = vmatprep.subr.mxu0 0.0
    %2079 = vmatpush1.msra.mxu0 0.0
    %2080 = vmatprep.subr.mxu0 0.0
    %2081 = vmatpush1.msra.mxu0 0.0
    %2082 = vmatprep.subr.mxu0 0.0
    %2083 = vmatpush1.msra.mxu0 0.0
    %2084 = vmatprep.subr.mxu0 0.0
    %2085 = vmatpush1.msra.mxu0 0.0
    %2086 = vmatprep.subr.mxu0 0.0
    %2087 = vmatpush1.msra.mxu0 0.0
    %2088 = vmatprep.subr.mxu0 0.0
    %2089 = vmatpush1.msra.mxu0 0.0
    %2090 = vmatprep.subr.mxu0 0.0
    %2091 = vmatpush1.msra.mxu0 0.0
    %2092 = vmatprep.subr.mxu0 0.0
    %2093 = vmatpush1.msra.mxu0 0.0
    %2094 = vmatprep.subr.mxu0 0.0
    %2095 = vmatpush1.msra.mxu0 0.0
    %2096 = vmatprep.subr.mxu0 0.0
    %2097 = vmatpush1.msra.mxu0 0.0
    %2098 = vmatprep.subr.mxu0 0.0
    %2099 = vmatpush1.msra.mxu0 0.0
    %2100 = vmatprep.subr.mxu0 0.0
    %2101 = vmatpush1.msra.mxu0 0.0
    %2102 = vmatprep.subr.mxu0 0.0
    %2103 = vmatpush1.msra.mxu0 0.0
    %2104 = vmatprep.subr.mxu0 0.0
    %2105 = vmatpush1.msra.mxu0 0.0
    %2106 = vmatprep.subr.mxu0 0.0
    %2107 = vmatpush1.msra.mxu0 0.0
    %2108 = vmatprep.subr.mxu0 0.0
    %2109 = vmatpush1.msra.mxu0 0.0
    %2110 = vmatprep.subr.mxu0 0.0
    %2111 = vmatpush1.msra.mxu0 0.0
    %2112 = vmatprep.subr.mxu0 0.0
    %2113 = vmatpush1.msra.mxu0 0.0
    %2114 = vmatprep.subr.mxu0 0.0
    %2115 = vmatpush1.msra.mxu0 0.0
    %2116 = vmatprep.subr.mxu0 0.0
    %2117 = vmatpush1.msra.mxu0 0.0
    %2118 = vmatprep.subr.mxu0 0.0
    %2119 = vmatpush1.msra.mxu0 0.0
    %2120 = vmatprep.subr.mxu0 0.0
    %2121 = vmatpush1.msra.mxu0 0.0
    %2122 = vmatprep.subr.mxu0 0.0
    %2123 = vmatpush1.msra.mxu0 0.0
    %2124 = vmatprep.subr.mxu0 0.0
    %2125 = vmatpush1.msra.mxu0 0.0
    %2126 = vmatprep.subr.mxu0 0.0
    %2127 = vmatpush1.msra.mxu0 0.0
    %2128 = vmatprep.subr.mxu0 0.0
    %2129 = vmatpush1.msra.mxu0 0.0
    %2130 = vmatprep.subr.mxu0 0.0
    %2131 = vmatpush1.msra.mxu0 0.0
    %2132 = vmatprep.subr.mxu0 0.0
    %2133 = vmatpush1.msra.mxu0 0.0
    %2134 = vmatprep.mubr.f32.mxu0 0.0
    %v2135 = vand.u32 %v1693, 4294901760
    %2136 = vmatmul.mubr.f32.gmra.mrb[0].mxu0 %v2135
    %v2137 = vpop.f32.mrb[0].mxu0
    %v2138 = vadd.f32 %v2066, %v2137
    %v2139 = vpop.f32.mrb[0].mxu0
    %2140 = vdwg.mxu0
    %v2141 = vxor.u32 %v2138, 2147483648
    %v2142 = vmul.f32 %v2141, 1.442695
    %v2143 = vpow.pop %v2142
    %v2144 = vadd.f32 %v2143, 1.0
    %v2145 = vrcp.pop %v2144
    %v2146 = vmul.f32 1.0, %v2145
    %vm2147 = vcmask 57344
    %2148 = vst.msk [vmem:[#allocation3] sm:$0x1] %vm2147, %v2146
    // Predicated region
    $region38: #{tpu_custom_call.1} parent=1 // pred_check
      _
    $region39: #{tpu_custom_call.1} parent=1 // pred_check_branch
      %2150 = sbr.rel (0) target = $region41
    $region40: #{tpu_custom_call.1} parent=1 // pred_region
      %s2152 = ssub.s32 16, 16
      %2153 = vsyncadd [#allocation4], %s2152
      %s2155 = sshll.u32 [#allocation3], 4
      %s2156 = int_to_ptr.vmem [resolvable:$true] %s2155
      %2158 = dma.vmem_to_hbm [thread:$0]  %s2156, 16, %s9, [#allocation4]
    $region41: #{tpu_custom_call.1} parent=1 // pred_fallthru
      _
    // Predicated region
    $region42: #{tpu_custom_call.1} parent=1 // pred_check
      _
    $region43: #{tpu_custom_call.1} parent=1 // pred_check_branch
      %2160 = sbr.rel (0) target = $region45
    $region44: #{tpu_custom_call.1} parent=1 // pred_region
      %2161 = dma.done [#allocation4], 16
    $region45: #{tpu_custom_call.1} parent=1 // pred_fallthru
      _
    %2162 = vsyncpa [#allocation4], 1

</llo_original>
